<compile_context>
chip_gen: v6e
topology: v6e:2x2x1
jax: 0.10.0
libtpu: 0.0.40
codegen_flags: <defaults>
</compile_context>

<pallas_src>
import math

import jax
import jax.numpy as jnp
from jax.experimental import pallas as pl
from jax.experimental.pallas import tpu as pltpu

BN_EPS = 1e-5


def _ceil_to(x, m):
    return ((x + m - 1) // m) * m


def _pick_tile(n, cap):
    """Largest multiple-of-8 divisor of n that is <= cap (None if none)."""
    t = min(cap, n)
    t -= t % 8
    while t >= 8:
        if n % t == 0:
            return t
        t -= 8
    return None


def _vmem_limit_bytes():
    """Per-generation scoped-VMEM budget: ~75% of physical per core, clamped
    to [32, 96] MiB (v5e/v6e: 96 of 128 MiB; v7x: 48 of 64 MiB)."""
    try:
        cap = pltpu.get_tpu_info().vmem_capacity_bytes
    except Exception:
        return 48 * 1024 * 1024
    return int(max(32 * 1024 * 1024, min(96 * 1024 * 1024, (cap * 3) // 4)))


# ----------------------------------------------------------------------------
# Kernel 1: conv-as-matmul with fused BatchNorm statistics.
#   grid = (M tiles,)  -- all parallel; weights are VMEM-resident.
#   outputs: z (bf16 conv output) and a per-M-tile stats slab
#            [col_sum; col_sumsq] reduced later in the wrapper.
# ----------------------------------------------------------------------------
def _conv_stats_kernel(x_ref, w_ref, z_ref, stats_ref):
    # bf16 x bf16 on the MXU, f32 result; the weights block is fetched once
    # (constant index_map) and stays resident across the whole grid.
    z = jnp.dot(x_ref[...], w_ref[...], preferred_element_type=jnp.float32)
    z_ref[...] = z.astype(z_ref.dtype)
    # Per-channel sum / sum-of-squares for training-mode BatchNorm, written to
    # this M tile's private slab row (no revisit / read-modify-write).
    zsum = jnp.sum(z, axis=0, keepdims=True)
    zsq = jnp.sum(z * z, axis=0, keepdims=True)
    stats_ref[...] = jnp.concatenate([zsum, zsq], axis=0).reshape(stats_ref.shape)


def _conv_stats_matmul(patches, weights):
    """(M,K)@(K,N) -> (bf16 z (Mp,N), f32 stats slab (n_m,2,N))."""
    M, K = patches.shape
    K2, N = weights.shape
    assert K2 == K
    vmem_limit = _vmem_limit_bytes()

    # Per-row working set: double-buffered bf16 patches + bf16 z plus the f32
    # dot result; keep it within half the budget (headroom for the resident
    # weights and compiler scratch).
    bytes_per_row = 2 * (2 * K) + 2 * (2 * N) + 4 * N
    cap = (vmem_limit // 2) // bytes_per_row
    cap = max(8, min(1024, cap - cap % 8))

    tm = _pick_tile(M, cap)
    if tm is None:
        # No multiple-of-8 divisor of M <= cap: fall back to zero-padding the
        # rows.  Zero patch rows contribute exactly 0 to the matmul and to the
        # BN sums (the conv bias is folded away), and the padded output rows
        # are sliced off after the BN+ReLU pass.
        tm = min(cap, _ceil_to(M, 8))
        Mp = _ceil_to(M, tm)
        patches = jnp.pad(patches, ((0, Mp - M), (0, 0)))
    else:
        Mp = M
    n_m = Mp // tm

    # TODO(synk): add a K/N-tiled fallback (3-axis grid) if the reshaped conv
    # weights ever get too large to stay resident in VMEM.
    z, stats = pl.pallas_call(
        _conv_stats_kernel,
        out_shape=(jax.ShapeDtypeStruct((Mp, N), jnp.bfloat16),
                   jax.ShapeDtypeStruct((n_m, 2, N), jnp.float32)),
        grid_spec=pltpu.PrefetchScalarGridSpec(
            num_scalar_prefetch=0,
            grid=(n_m,),
            in_specs=[
                pl.BlockSpec((tm, K), lambda i: (i, 0)),   # streamed once
                pl.BlockSpec((K, N), lambda i: (0, 0)),    # VMEM-resident
            ],
            out_specs=[
                pl.BlockSpec((tm, N), lambda i: (i, 0)),
                pl.BlockSpec((1, 2, N), lambda i: (i, 0, 0)),
            ],
        ),
        compiler_params=pltpu.CompilerParams(
            dimension_semantics=("parallel",),
            vmem_limit_bytes=vmem_limit),
    )(patches, weights)
    return z, stats


# ----------------------------------------------------------------------------
# Kernel 2: fused BatchNorm apply (per-channel scale/shift) + ReLU, one pass.
# ----------------------------------------------------------------------------
def _bn_relu_kernel(z_ref, s_ref, b_ref, o_ref):
    z = z_ref[...].astype(jnp.float32)          # bf16 activation -> f32 math
    o_ref[...] = jnp.maximum(z * s_ref[...] + b_ref[...], 0.0).astype(o_ref.dtype)


def _bn_relu(z, scale, shift, M, N, out_dtype):
    Mp, Nz = z.shape
    assert Nz == N
    vmem_limit = _vmem_limit_bytes()

    # Lane-dense folding: with Cout < 128 the natural (row, channel) layout
    # would use masked partial stores; folding f rows into the lane dim makes
    # every load/store a full >=128-lane access (reshape/tile are cheap,
    # contiguous XLA ops in the wrapper).
    f = 128 // math.gcd(N, 128)
    if f > 1 and Mp % f == 0:
        zf = z.reshape(Mp // f, f * N)
        scale_v = jnp.tile(scale.astype(jnp.float32), f)
        shift_v = jnp.tile(shift.astype(jnp.float32), f)
    else:
        f = 1
        zf = z
        scale_v = scale.astype(jnp.float32)
        shift_v = shift.astype(jnp.float32)
    Mf, Nf = zf.shape
    scale2 = scale_v.reshape(1, Nf)
    shift2 = shift_v.reshape(1, Nf)

    out_bytes = jnp.dtype(out_dtype).itemsize
    bytes_per_row = Nf * 2 * (2 + out_bytes)     # double-buffered input + output
    cap = (vmem_limit // 2) // bytes_per_row
    cap = max(8, min(2048, cap - cap % 8))       # large tiles: pure HBM-BW pass
    tm = _pick_tile(Mf, cap) or Mf               # full extent if no clean divisor

    y = pl.pallas_call(
        _bn_relu_kernel,
        out_shape=jax.ShapeDtypeStruct((Mf, Nf), out_dtype),
        grid_spec=pltpu.PrefetchScalarGridSpec(
            num_scalar_prefetch=0,
            grid=(Mf // tm,),
            in_specs=[
                pl.BlockSpec((tm, Nf), lambda i: (i, 0)),
                pl.BlockSpec((1, Nf), lambda i: (0, 0)),
                pl.BlockSpec((1, Nf), lambda i: (0, 0)),
            ],
            out_specs=pl.BlockSpec((tm, Nf), lambda i: (i, 0)),
        ),
        compiler_params=pltpu.CompilerParams(
            dimension_semantics=("parallel",),
            vmem_limit_bytes=vmem_limit),
    )(zf, scale2, shift2)

    y = y.reshape(Mp, N)
    return y[:M] if Mp != M else y


# ----------------------------------------------------------------------------
# Plain-JAX glue: im2col patch extraction (bf16) and the forward wrapper.
# ----------------------------------------------------------------------------
def _im2col(x, k, stride, pad):
    """x: (B,H,W,C) -> patches (B*Ho*Wo, k*k*C) in (ky,kx,cin) column order."""
    B, H, W, C = x.shape
    if pad:
        x = jnp.pad(x, ((0, 0), (pad, pad), (pad, pad), (0, 0)))
    Ho = (H + 2 * pad - k) // stride + 1
    Wo = (W + 2 * pad - k) // stride + 1
    cols = []
    for dy in range(k):
        for dx in range(k):
            cols.append(x[:, dy:dy + stride * (Ho - 1) + 1:stride,
                          dx:dx + stride * (Wo - 1) + 1:stride, :])
    patches = jnp.concatenate(cols, axis=-1)
    return patches.reshape(B * Ho * Wo, k * k * C), Ho, Wo


def conv_bn_relu(x_nchw, conv_w, conv_b, bn_gamma, bn_beta, *,
                 stride=1, padding=1, out_dtype=jnp.float32):
    """relu(batchnorm(conv2d(x))) with training-mode (batch-stat) BatchNorm."""
    x_nchw = x_nchw.astype(jnp.float32)
    B, Cin, H, W = x_nchw.shape
    Cout, Cin_w, KH, KW = conv_w.shape
    assert Cin_w == Cin and KH == KW

    # NCHW -> NHWC (channels on the lane dim).
    x = jnp.transpose(x_nchw, (0, 2, 3, 1))

    # im2col patches in bf16 (MXU operands; halves patch HBM traffic vs f32).
    # TODO(synk): direct shifted-window conv kernel to avoid the KH*KW blow-up.
    patches, Ho, Wo = _im2col(x.astype(jnp.bfloat16), KH, stride, padding)
    M = B * Ho * Wo

    # Weights: (Cout,Cin,KH,KW) -> (KH,KW,Cin,Cout) -> (K,Cout) to match the
    # (ky,kx,cin) patch column order; bf16 for the MXU, kept VMEM-resident.
    w2d = jnp.transpose(conv_w, (2, 3, 1, 0)).reshape(KH * KW * Cin, Cout)
    w2d = w2d.astype(jnp.bfloat16)

    # The conv bias folds away: training-mode BatchNorm subtracts the
    # per-channel batch mean, which cancels any per-channel constant exactly.
    del conv_b

    z, stats = _conv_stats_matmul(patches, w2d)

    # Reduce the per-M-tile stats slab; training-mode BatchNorm statistics
    # (biased variance, eps=1e-5) from per-channel sums.
    # TODO(synk): E[x^2]-E[x]^2 can cancel for huge-magnitude activations;
    # switch to a shifted/Welford reduction if numerics ever drift.
    stats = jnp.sum(stats, axis=0)
    mean = stats[0] / M
    var = jnp.maximum(stats[1] / M - mean * mean, 0.0)
    scale = bn_gamma.astype(jnp.float32) * jax.lax.rsqrt(var + BN_EPS)
    shift = bn_beta.astype(jnp.float32) - mean * scale

    y = _bn_relu(z, scale, shift, M, Cout, out_dtype)
    y = y.reshape(B, Ho, Wo, Cout)
    return jnp.transpose(y, (0, 3, 1, 2))       # back to NCHW


if __name__ == "__main__":
    key = jax.random.PRNGKey(0)
    kx, kw, kb = jax.random.split(key, 3)

    B, Cin, H, W = 2, 4, 16, 16
    Cout, KSZ = 64, 3

    x = jax.random.normal(kx, (B, Cin, H, W), dtype=jnp.float32)
    fan_in = Cin * KSZ * KSZ
    bound = 1.0 / (fan_in ** 0.5)
    w = jax.random.uniform(kw, (Cout, Cin, KSZ, KSZ), jnp.float32, -bound, bound)
    b = jax.random.uniform(kb, (Cout,), jnp.float32, -bound, bound)
    gamma = jnp.ones((Cout,), jnp.float32)      # fresh nn.BatchNorm2d init
    beta = jnp.zeros((Cout,), jnp.float32)

    fwd = jax.jit(conv_bn_relu, static_argnames=("stride", "padding", "out_dtype"))
    out = jax.block_until_ready(fwd(x, w, b, gamma, beta, stride=1, padding=1))

    assert out.shape == (B, Cout, H, W), out.shape
    assert bool(jnp.all(jnp.isfinite(out)))

    # Plain-JAX f32 reference of the exact ConvBNReLU forward (training-mode
    # BatchNorm: batch statistics, biased variance, eps=1e-5); loose tolerance
    # accounts for the bf16 MXU operands / bf16 intermediate activation.
    ref_z = jax.lax.conv_general_dilated(
        x, w, window_strides=(1, 1), padding=((1, 1), (1, 1)),
        dimension_numbers=("NCHW", "OIHW", "NCHW"))
    ref_z = ref_z + b[None, :, None, None]
    mu = ref_z.mean(axis=(0, 2, 3), keepdims=True)
    var = ref_z.var(axis=(0, 2, 3), keepdims=True)
    ref = (ref_z - mu) * jax.lax.rsqrt(var + BN_EPS)
    ref = jnp.maximum(ref * gamma[None, :, None, None]
                      + beta[None, :, None, None], 0.0)
    max_err = float(jnp.max(jnp.abs(out.astype(jnp.float32) - ref)))
    assert max_err < 0.1, f"max abs error vs reference: {max_err}"

    print("KERNEL_OK")
</pallas_src>

<mosaic_0001>
module attributes {stable_mosaic.version = 11 : i64} {
  func.func @_conv_stats_kernel(%arg0: i32, %arg1: memref<512x36xbf16, #tpu.memory_space<vmem>>, %arg2: memref<36x64xbf16, #tpu.memory_space<vmem>>, %arg3: memref<512x64xbf16, #tpu.memory_space<vmem>>, %arg4: memref<1x2x64xf32, #tpu.memory_space<vmem>>) attributes {dimension_semantics = [#tpu.dimension_semantics<parallel>], iteration_bounds = array<i64: 1>, scalar_prefetch = 0 : i64, scratch_operands = 0 : i64, tpu.core_type = #tpu.core_type<tc>, window_params = [{transform_indices = @transform_0, window_bounds = array<i64: 512, 36>}, {pipeline_mode = #tpu.pipeline_mode<synchronous>, transform_indices = @transform_1, window_bounds = array<i64: 36, 64>}, {transform_indices = @transform_2, window_bounds = array<i64: 512, 64>}, {transform_indices = @transform_3, window_bounds = array<i64: 1, 2, 64>}]} {
    %c0 = arith.constant 0 : index
    %c0_0 = arith.constant 0 : index
    %0 = vector.load %arg1[%c0, %c0_0] : memref<512x36xbf16, #tpu.memory_space<vmem>>, vector<512x36xbf16>
    %c0_1 = arith.constant 0 : index
    %c0_2 = arith.constant 0 : index
    %1 = vector.load %arg2[%c0_1, %c0_2] : memref<36x64xbf16, #tpu.memory_space<vmem>>, vector<36x64xbf16>
    %cst = arith.constant dense<0.000000e+00> : vector<512x64xf32>
    %2 = tpu.matmul %0, %1, %cst {dimension_numbers = #tpu.dot_dimension_numbers<[1], [0], [0], [1], [0, 0, 1, 1], [], []>} : vector<512x36xbf16>, vector<36x64xbf16>, vector<512x64xf32> -> vector<512x64xf32>
    %3 = arith.truncf %2 : vector<512x64xf32> to vector<512x64xbf16>
    %c0_3 = arith.constant 0 : index
    %c0_4 = arith.constant 0 : index
    %4 = vector.load %arg3[%c0_3, %c0_4] : memref<512x64xbf16, #tpu.memory_space<vmem>>, vector<512x64xbf16>
    tpu.vector_store %arg3[%c0_3, %c0_4], %3 {strides = array<i32>} : memref<512x64xbf16, #tpu.memory_space<vmem>>, vector<512x64xbf16>,
    %cst_5 = arith.constant dense<0.000000e+00> : vector<64xf32>
    %5 = vector.multi_reduction <add>, %2, %cst_5 [0] : vector<512x64xf32> to vector<64xf32>
    %6 = vector.shape_cast %5 : vector<64xf32> to vector<1x64xf32>
    %7 = arith.mulf %2, %2 : vector<512x64xf32>
    %cst_6 = arith.constant dense<0.000000e+00> : vector<64xf32>
    %8 = vector.multi_reduction <add>, %7, %cst_6 [0] : vector<512x64xf32> to vector<64xf32>
    %9 = vector.shape_cast %8 : vector<64xf32> to vector<1x64xf32>
    %10 = tpu.concatenate %6, %9 in 0 : vector<1x64xf32>, vector<1x64xf32> -> vector<2x64xf32>
    %11 = vector.shape_cast %10 : vector<2x64xf32> to vector<1x2x64xf32>
    %c0_7 = arith.constant 0 : index
    %c0_8 = arith.constant 0 : index
    %c0_9 = arith.constant 0 : index
    %12 = vector.load %arg4[%c0_7, %c0_8, %c0_9] : memref<1x2x64xf32, #tpu.memory_space<vmem>>, vector<1x2x64xf32>
    tpu.vector_store %arg4[%c0_7, %c0_8, %c0_9], %11 {strides = array<i32>} : memref<1x2x64xf32, #tpu.memory_space<vmem>>, vector<1x2x64xf32>,
    return
  }
  func.func @transform_0(%arg0: i32) -> (i32, i32) {
    %c0_i32 = arith.constant 0 : i32
    %c0_i32_0 = arith.constant 0 : i32
    return %arg0, %c0_i32 : i32, i32
  }
  func.func @transform_1(%arg0: i32) -> (i32, i32) {
    %c0_i32 = arith.constant 0 : i32
    %c0_i32_0 = arith.constant 0 : i32
    %c0_i32_1 = arith.constant 0 : i32
    return %c0_i32, %c0_i32_0 : i32, i32
  }
  func.func @transform_2(%arg0: i32) -> (i32, i32) {
    %c0_i32 = arith.constant 0 : i32
    %c0_i32_0 = arith.constant 0 : i32
    return %arg0, %c0_i32 : i32, i32
  }
  func.func @transform_3(%arg0: i32) -> (i32, i32, i32) {
    %c0_i32 = arith.constant 0 : i32
    %c0_i32_0 = arith.constant 0 : i32
    %c0_i32_1 = arith.constant 0 : i32
    return %arg0, %c0_i32, %c0_i32_0 : i32, i32, i32
  }
}

module attributes {stable_mosaic.version = 11 : i64} {
  func.func @_bn_relu_kernel(%arg0: i32, %arg1: memref<256x128xbf16, #tpu.memory_space<vmem>>, %arg2: memref<1x128xf32, #tpu.memory_space<vmem>>, %arg3: memref<1x128xf32, #tpu.memory_space<vmem>>, %arg4: memref<256x128xf32, #tpu.memory_space<vmem>>) attributes {dimension_semantics = [#tpu.dimension_semantics<parallel>], iteration_bounds = array<i64: 1>, scalar_prefetch = 0 : i64, scratch_operands = 0 : i64, tpu.core_type = #tpu.core_type<tc>, window_params = [{transform_indices = @transform_0, window_bounds = array<i64: 256, 128>}, {pipeline_mode = #tpu.pipeline_mode<synchronous>, transform_indices = @transform_1, window_bounds = array<i64: 1, 128>}, {pipeline_mode = #tpu.pipeline_mode<synchronous>, transform_indices = @transform_2, window_bounds = array<i64: 1, 128>}, {transform_indices = @transform_3, window_bounds = array<i64: 256, 128>}]} {
    %c0 = arith.constant 0 : index
    %c0_0 = arith.constant 0 : index
    %0 = vector.load %arg1[%c0, %c0_0] : memref<256x128xbf16, #tpu.memory_space<vmem>>, vector<256x128xbf16>
    %1 = arith.extf %0 : vector<256x128xbf16> to vector<256x128xf32>
    %c0_1 = arith.constant 0 : index
    %c0_2 = arith.constant 0 : index
    %2 = vector.load %arg2[%c0_1, %c0_2] : memref<1x128xf32, #tpu.memory_space<vmem>>, vector<1x128xf32>
    %3 = vector.broadcast %2 : vector<1x128xf32> to vector<256x128xf32>
    %4 = arith.mulf %1, %3 : vector<256x128xf32>
    %c0_3 = arith.constant 0 : index
    %c0_4 = arith.constant 0 : index
    %5 = vector.load %arg3[%c0_3, %c0_4] : memref<1x128xf32, #tpu.memory_space<vmem>>, vector<1x128xf32>
    %6 = vector.broadcast %5 : vector<1x128xf32> to vector<256x128xf32>
    %7 = arith.addf %4, %6 : vector<256x128xf32>
    %cst = arith.constant 0.000000e+00 : f32
    %8 = vector.broadcast %cst : f32 to vector<256x128xf32>
    %9 = arith.maximumf %7, %8 : vector<256x128xf32>
    %c0_5 = arith.constant 0 : index
    %c0_6 = arith.constant 0 : index
    %10 = vector.load %arg4[%c0_5, %c0_6] : memref<256x128xf32, #tpu.memory_space<vmem>>, vector<256x128xf32>
    tpu.vector_store %arg4[%c0_5, %c0_6], %9 {strides = array<i32>} : memref<256x128xf32, #tpu.memory_space<vmem>>, vector<256x128xf32>,
    return
  }
  func.func @transform_0(%arg0: i32) -> (i32, i32) {
    %c0_i32 = arith.constant 0 : i32
    %c0_i32_0 = arith.constant 0 : i32
    return %arg0, %c0_i32 : i32, i32
  }
  func.func @transform_1(%arg0: i32) -> (i32, i32) {
    %c0_i32 = arith.constant 0 : i32
    %c0_i32_0 = arith.constant 0 : i32
    %c0_i32_1 = arith.constant 0 : i32
    return %c0_i32, %c0_i32_0 : i32, i32
  }
  func.func @transform_2(%arg0: i32) -> (i32, i32) {
    %c0_i32 = arith.constant 0 : i32
    %c0_i32_0 = arith.constant 0 : i32
    %c0_i32_1 = arith.constant 0 : i32
    return %c0_i32, %c0_i32_0 : i32, i32
  }
  func.func @transform_3(%arg0: i32) -> (i32, i32) {
    %c0_i32 = arith.constant 0 : i32
    %c0_i32_0 = arith.constant 0 : i32
    return %arg0, %c0_i32 : i32, i32
  }
}

</mosaic_0001>

<llo_original>
// kernel: tile.13
$region0: #{tile.13}
  #allocation0 [shape = 's32[1]{0}', space=sflag, size = 0x4, scoped, tag = 'scoped memory for tile.13']
  %s0 = inlined_call_operand.vmem [shape: f32[64], index: 0, kind: input, shape index: {}]
  %s1 = inlined_call_operand.vmem [shape: f32[2,64], index: 1, kind: output, shape index: {}]
  // Predicated region
  $region2: #{tile.13} parent=0 // pred_check
    _
  $region3: #{tile.13} parent=0 // pred_check_branch
    %3 = sbr.rel (0) target = $region5
  $region4: #{tile.13} parent=0 // pred_region
    _
  $region5: #{tile.13} parent=0 // pred_fallthru
    _
  %v4 = vld [vmem:[%s0] ss:$0 sm:$0xff]
  %5 = vst [vmem:[%s1] sm:$0x3] %v4

// kernel: tile.18
$region0: #{tile.18}
  %s0 = inlined_call_operand.vmem [shape: f32[2,64], index: 0, kind: input, shape index: {}]
  %s1 = inlined_call_operand.vmem [shape: f32[1,128], index: 1, kind: output, shape index: {}]
  $region1: #{tile.18} parent=0
    #allocation0 [shape = 'u8[4096]{0}', space=vmem, size = 0x1000, scoped, tag = 'scoped mem for output reshape']
    #allocation1 [shape = 'u8[4096]{0}', space=vmem, size = 0x1000, scoped, tag = 'scoped mem for input reshape']
    %s3 = sshll.u32 1, 2
    %s4 = ssub.s32 %s3, 1
    %v5 = vld [vmem:[%s0] sm:%s4]
    %6 = vst [vmem:[#allocation1] sm:%s4] %v5
    %v7 = vld [vmem:[#allocation1] sm:$0x1]
    %vm8 = vcmask 523264
    %9 = vst.msk [vmem:[#allocation0] sm:$0x1] %vm8, %v7
    %s10 = scalar_lea.vmem [#allocation1], 1
    %v11 = vld [vmem:[%s10] sm:$0x1]
    %12 = vrot.lane.b32.xlu0 %v11, 64
    %v13 = vpop.permute.xlu0 %12
    %vm14 = vcmask 1048064
    %15 = vst.msk [vmem:[#allocation0] sm:$0x1] %vm14, %v13
    %s17 = sshll.u32 1, 1
    %s18 = ssub.s32 %s17, 1
    %v20 = vld [vmem:[#allocation0] sm:%s18]
    %s21 = sshll.u32 1, 1
    %s22 = ssub.s32 %s21, 1
    %23 = vst [vmem:[%s1] sm:%s22] %v20

// kernel: conv_bn_relu.3
$region0: #{conv_bn_relu.3}
  #allocation0 [shape = 'u32[]', space=smem, size = 0x4, offset = 0x4, fixed_abs, tag = 'smem constant byte address 0x4 - core index']
  #allocation1 [shape = 'u32[144,128]{1,0:T(1,128)}', space=vmem, size = 0x12000, scoped, tag = 'internal scratch']
  %s0 = inlined_call_operand.vmem [shape: bf16[256,128], index: 0, kind: input, shape index: {}]
  %s1 = inlined_call_operand.vmem [shape: f32[1,128], index: 1, kind: input, shape index: {}]
  %s2 = inlined_call_operand.vmem [shape: f32[1,128], index: 2, kind: input, shape index: {}]
  %s3 = inlined_call_operand.vmem [shape: f32[256,128], index: 3, kind: output, shape index: {}]
  %s4 = sld [smem:[#allocation0]]
  $region22: #{conv_bn_relu.3} parent=0
    _
  %s6 = ssub.s32 1, %s4
  %s7 = scalar_select 0, %s6, %s4
  // Predicated region
  $region2: #{conv_bn_relu.3} parent=0 // pred_check
    _
  $region3: #{conv_bn_relu.3} parent=0 // pred_check_branch
    %9 = sbr.rel (0) target = $region5
  $region4: #{conv_bn_relu.3} parent=0 // pred_region
    _
  $region5: #{conv_bn_relu.3} parent=0 // pred_fallthru
    _
  // Predicated region
  $region6: #{conv_bn_relu.3} parent=0 // pred_check
    _
  $region7: #{conv_bn_relu.3} parent=0 // pred_check_branch
    %11 = sbr.rel (0) target = $region9
  $region8: #{conv_bn_relu.3} parent=0 // pred_region
    _
  $region9: #{conv_bn_relu.3} parent=0 // pred_fallthru
    _
  // Predicated region
  $region10: #{conv_bn_relu.3} parent=0 // pred_check
    _
  $region11: #{conv_bn_relu.3} parent=0 // pred_check_branch
    %13 = sbr.rel (0) target = $region13
  $region12: #{conv_bn_relu.3} parent=0 // pred_region
    _
  $region13: #{conv_bn_relu.3} parent=0 // pred_fallthru
    _
  %v14 = vld [vmem:[%s0] sm:$0xf]
  %v15 = vld [vmem:[%s0 + $0x4] sm:$0xf]
  %v16 = vld [vmem:[%s0 + $0x8] sm:$0xf]
  %v17 = vld [vmem:[%s0 + $0xc] sm:$0xf]
  %v18 = vld [vmem:[%s0 + $0x10] sm:$0xf]
  %v19 = vld [vmem:[%s0 + $0x14] sm:$0xf]
  %v20 = vld [vmem:[%s0 + $0x18] sm:$0xf]
  %v21 = vld [vmem:[%s0 + $0x1c] sm:$0xf]
  %v22 = vld [vmem:[%s0 + $0x20] sm:$0xf]
  %v23 = vld [vmem:[%s0 + $0x24] sm:$0xf]
  %v24 = vld [vmem:[%s0 + $0x28] sm:$0xf]
  %v25 = vld [vmem:[%s0 + $0x2c] sm:$0xf]
  %v26 = vld [vmem:[%s0 + $0x30] sm:$0xf]
  %v27 = vld [vmem:[%s0 + $0x34] sm:$0xf]
  %v28 = vld [vmem:[%s0 + $0x38] sm:$0xf]
  %v29 = vld [vmem:[%s0 + $0x3c] sm:$0xf]
  %v30 = vld [vmem:[%s0 + $0x40] sm:$0xf]
  %v31 = vld [vmem:[%s0 + $0x44] sm:$0xf]
  %v32 = vld [vmem:[%s0 + $0x48] sm:$0xf]
  %v33 = vld [vmem:[%s0 + $0x4c] sm:$0xf]
  %v34 = vld [vmem:[%s0 + $0x50] sm:$0xf]
  %v35 = vld [vmem:[%s0 + $0x54] sm:$0xf]
  %v36 = vld [vmem:[%s0 + $0x58] sm:$0xf]
  %v37 = vld [vmem:[%s0 + $0x5c] sm:$0xf]
  %v38 = vld [vmem:[%s0 + $0x60] sm:$0xf]
  %v39 = vld [vmem:[%s0 + $0x64] sm:$0xf]
  %v40 = vld [vmem:[%s0 + $0x68] sm:$0xf]
  %v41 = vld [vmem:[%s0 + $0x6c] sm:$0xf]
  %v42 = vld [vmem:[%s0 + $0x70] sm:$0xf]
  %v43 = vld [vmem:[%s0 + $0x74] sm:$0xf]
  %v44 = vld [vmem:[%s0 + $0x78] sm:$0xf]
  %v45 = vld [vmem:[%s0 + $0x7c] sm:$0xf]
  %v46 = vunpack.c.l.bf16 %v14
  %v47 = vunpack.c.l.bf16 %v15
  %v48 = vunpack.c.l.bf16 %v16
  %v49 = vunpack.c.l.bf16 %v17
  %v50 = vunpack.c.l.bf16 %v18
  %v51 = vunpack.c.l.bf16 %v19
  %v52 = vunpack.c.l.bf16 %v20
  %v53 = vunpack.c.l.bf16 %v21
  %v54 = vunpack.c.l.bf16 %v22
  %v55 = vunpack.c.l.bf16 %v23
  %v56 = vunpack.c.l.bf16 %v24
  %v57 = vunpack.c.l.bf16 %v25
  %v58 = vunpack.c.l.bf16 %v26
  %v59 = vunpack.c.l.bf16 %v27
  %v60 = vunpack.c.l.bf16 %v28
  %v61 = vunpack.c.l.bf16 %v29
  %v62 = vunpack.c.l.bf16 %v30
  %v63 = vunpack.c.l.bf16 %v31
  %v64 = vunpack.c.l.bf16 %v32
  %v65 = vunpack.c.l.bf16 %v33
  %v66 = vunpack.c.l.bf16 %v34
  %v67 = vunpack.c.l.bf16 %v35
  %v68 = vunpack.c.l.bf16 %v36
  %v69 = vunpack.c.l.bf16 %v37
  %v70 = vunpack.c.l.bf16 %v38
  %v71 = vunpack.c.l.bf16 %v39
  %v72 = vunpack.c.l.bf16 %v40
  %v73 = vunpack.c.l.bf16 %v41
  %v74 = vunpack.c.l.bf16 %v42
  %v75 = vunpack.c.l.bf16 %v43
  %v76 = vunpack.c.l.bf16 %v44
  %v77 = vunpack.c.l.bf16 %v45
  %v78 = vld [vmem:[%s1] sm:$0x1]
  %v80 = vlaneseq
  %v81 = vshrl.u32 %v80, 7
  %v82 = vsub.s32 0, %v81
  %v83 = vrot.slane %v78, %v82
  %v85 = vmul.f32 %v46, %v83
  %v86 = vmul.f32 %v47, %v83
  %v87 = vmul.f32 %v48, %v83
  %v88 = vmul.f32 %v49, %v83
  %v89 = vmul.f32 %v50, %v83
  %v90 = vmul.f32 %v51, %v83
  %v91 = vmul.f32 %v52, %v83
  %v92 = vmul.f32 %v53, %v83
  %v93 = vmul.f32 %v54, %v83
  %v94 = vmul.f32 %v55, %v83
  %v95 = vmul.f32 %v56, %v83
  %v96 = vmul.f32 %v57, %v83
  %v97 = vmul.f32 %v58, %v83
  %v98 = vmul.f32 %v59, %v83
  %v99 = vmul.f32 %v60, %v83
  %v100 = vmul.f32 %v61, %v83
  %v101 = vmul.f32 %v62, %v83
  %v102 = vmul.f32 %v63, %v83
  %v103 = vmul.f32 %v64, %v83
  %v104 = vmul.f32 %v65, %v83
  %v105 = vmul.f32 %v66, %v83
  %v106 = vmul.f32 %v67, %v83
  %v107 = vmul.f32 %v68, %v83
  %v108 = vmul.f32 %v69, %v83
  %v109 = vmul.f32 %v70, %v83
  %v110 = vmul.f32 %v71, %v83
  %v111 = vmul.f32 %v72, %v83
  %v112 = vmul.f32 %v73, %v83
  %v113 = vmul.f32 %v74, %v83
  %v114 = vmul.f32 %v75, %v83
  %v115 = vmul.f32 %v76, %v83
  %v116 = vmul.f32 %v77, %v83
  %v117 = vld [vmem:[%s2] sm:$0x1]
  %v119 = vlaneseq
  %v120 = vshrl.u32 %v119, 7
  %v121 = vsub.s32 0, %v120
  %v122 = vrot.slane %v117, %v121
  %v124 = vadd.f32 %v85, %v122
  %v125 = vadd.f32 %v86, %v122
  %v126 = vadd.f32 %v87, %v122
  %v127 = vadd.f32 %v88, %v122
  %v128 = vadd.f32 %v89, %v122
  %v129 = vadd.f32 %v90, %v122
  %v130 = vadd.f32 %v91, %v122
  %v131 = vadd.f32 %v92, %v122
  %v132 = vadd.f32 %v93, %v122
  %v133 = vadd.f32 %v94, %v122
  %v134 = vadd.f32 %v95, %v122
  %v135 = vadd.f32 %v96, %v122
  %v136 = vadd.f32 %v97, %v122
  %v137 = vadd.f32 %v98, %v122
  %v138 = vadd.f32 %v99, %v122
  %v139 = vadd.f32 %v100, %v122
  %v140 = vadd.f32 %v101, %v122
  %v141 = vadd.f32 %v102, %v122
  %v142 = vadd.f32 %v103, %v122
  %v143 = vadd.f32 %v104, %v122
  %v144 = vadd.f32 %v105, %v122
  %v145 = vadd.f32 %v106, %v122
  %v146 = vadd.f32 %v107, %v122
  %v147 = vadd.f32 %v108, %v122
  %v148 = vadd.f32 %v109, %v122
  %v149 = vadd.f32 %v110, %v122
  %v150 = vadd.f32 %v111, %v122
  %v151 = vadd.f32 %v112, %v122
  %v152 = vadd.f32 %v113, %v122
  %v153 = vadd.f32 %v114, %v122
  %v154 = vadd.f32 %v115, %v122
  %v155 = vadd.f32 %v116, %v122
  %v156 = vmax.f32 %v124, 0.0
  %v157 = vmax.f32 %v125, 0.0
  %v158 = vmax.f32 %v126, 0.0
  %v159 = vmax.f32 %v127, 0.0
  %v160 = vmax.f32 %v128, 0.0
  %v161 = vmax.f32 %v129, 0.0
  %v162 = vmax.f32 %v130, 0.0
  %v163 = vmax.f32 %v131, 0.0
  %v164 = vmax.f32 %v132, 0.0
  %v165 = vmax.f32 %v133, 0.0
  %v166 = vmax.f32 %v134, 0.0
  %v167 = vmax.f32 %v135, 0.0
  %v168 = vmax.f32 %v136, 0.0
  %v169 = vmax.f32 %v137, 0.0
  %v170 = vmax.f32 %v138, 0.0
  %v171 = vmax.f32 %v139, 0.0
  %v172 = vmax.f32 %v140, 0.0
  %v173 = vmax.f32 %v141, 0.0
  %v174 = vmax.f32 %v142, 0.0
  %v175 = vmax.f32 %v143, 0.0
  %v176 = vmax.f32 %v144, 0.0
  %v177 = vmax.f32 %v145, 0.0
  %v178 = vmax.f32 %v146, 0.0
  %v179 = vmax.f32 %v147, 0.0
  %v180 = vmax.f32 %v148, 0.0
  %v181 = vmax.f32 %v149, 0.0
  %v182 = vmax.f32 %v150, 0.0
  %v183 = vmax.f32 %v151, 0.0
  %v184 = vmax.f32 %v152, 0.0
  %v185 = vmax.f32 %v153, 0.0
  %v186 = vmax.f32 %v154, 0.0
  %v187 = vmax.f32 %v155, 0.0
  %188 = vst [vmem:[%s3] sm:$0xff] %v156
  %189 = vst [vmem:[%s3 + $0x8] sm:$0xff] %v157
  %190 = vst [vmem:[%s3 + $0x10] sm:$0xff] %v158
  %191 = vst [vmem:[%s3 + $0x18] sm:$0xff] %v159
  %192 = vst [vmem:[%s3 + $0x20] sm:$0xff] %v160
  %193 = vst [vmem:[%s3 + $0x28] sm:$0xff] %v161
  %194 = vst [vmem:[%s3 + $0x30] sm:$0xff] %v162
  %195 = vst [vmem:[%s3 + $0x38] sm:$0xff] %v163
  %196 = vst [vmem:[%s3 + $0x40] sm:$0xff] %v164
  %197 = vst [vmem:[%s3 + $0x48] sm:$0xff] %v165
  %198 = vst [vmem:[%s3 + $0x50] sm:$0xff] %v166
  %199 = vst [vmem:[%s3 + $0x58] sm:$0xff] %v167
  %200 = vst [vmem:[%s3 + $0x60] sm:$0xff] %v168
  %201 = vst [vmem:[%s3 + $0x68] sm:$0xff] %v169
  %202 = vst [vmem:[%s3 + $0x70] sm:$0xff] %v170
  %203 = vst [vmem:[%s3 + $0x78] sm:$0xff] %v171
  %204 = vst [vmem:[%s3 + $0x80] sm:$0xff] %v172
  %205 = vst [vmem:[%s3 + $0x88] sm:$0xff] %v173
  %206 = vst [vmem:[%s3 + $0x90] sm:$0xff] %v174
  %207 = vst [vmem:[%s3 + $0x98] sm:$0xff] %v175
  %208 = vst [vmem:[%s3 + $0xa0] sm:$0xff] %v176
  %209 = vst [vmem:[%s3 + $0xa8] sm:$0xff] %v177
  %210 = vst [vmem:[%s3 + $0xb0] sm:$0xff] %v178
  %211 = vst [vmem:[%s3 + $0xb8] sm:$0xff] %v179
  %212 = vst [vmem:[%s3 + $0xc0] sm:$0xff] %v180
  %213 = vst [vmem:[%s3 + $0xc8] sm:$0xff] %v181
  %214 = vst [vmem:[%s3 + $0xd0] sm:$0xff] %v182
  %215 = vst [vmem:[%s3 + $0xd8] sm:$0xff] %v183
  %216 = vst [vmem:[%s3 + $0xe0] sm:$0xff] %v184
  %217 = vst [vmem:[%s3 + $0xe8] sm:$0xff] %v185
  %218 = vst [vmem:[%s3 + $0xf0] sm:$0xff] %v186
  %219 = vst [vmem:[%s3 + $0xf8] sm:$0xff] %v187
  // Predicated region
  $region14: #{conv_bn_relu.3} parent=0 // pred_check
    _
  $region15: #{conv_bn_relu.3} parent=0 // pred_check_branch
    %221 = sbr.rel (0) target = $region17
  $region16: #{conv_bn_relu.3} parent=0 // pred_region
    _
  $region17: #{conv_bn_relu.3} parent=0 // pred_fallthru
    _
  // Predicated region
  $region18: #{conv_bn_relu.3} parent=0 // pred_check
    _
  $region19: #{conv_bn_relu.3} parent=0 // pred_check_branch
    %223 = sbr.rel (0) target = $region21
  $region20: #{conv_bn_relu.3} parent=0 // pred_region
    _
  $region21: #{conv_bn_relu.3} parent=0 // pred_fallthru
    _

// kernel: conv_bn_relu.2
$region0: #{conv_bn_relu.2}
  #allocation0 [shape = 'u32[]', space=smem, size = 0x4, offset = 0x4, fixed_abs, tag = 'smem constant byte address 0x4 - core index']
  #allocation1 [shape = 'u32[144,128]{1,0:T(1,128)}', space=vmem, size = 0x12000, scoped, tag = 'internal scratch']
  %s0 = inlined_call_operand.vmem [shape: bf16[512,36], index: 0, kind: input, shape index: {}]
  %s1 = inlined_call_operand.vmem [shape: bf16[36,64], index: 1, kind: input, shape index: {}]
  %s2 = inlined_call_operand.vmem [shape: bf16[512,64], index: 2, kind: output, shape index: {0}]
  %s3 = inlined_call_operand.vmem [shape: f32[1,2,64], index: 3, kind: output, shape index: {1}]
  %4 = xla_tuple %s2, %s3
  %s5 = sld [smem:[#allocation0]]
  $region26: #{conv_bn_relu.2} parent=0
    _
  %s7 = ssub.s32 1, %s5
  %s8 = scalar_select 0, %s7, %s5
  // Predicated region
  $region2: #{conv_bn_relu.2} parent=0 // pred_check
    _
  $region3: #{conv_bn_relu.2} parent=0 // pred_check_branch
    %10 = sbr.rel (0) target = $region5
  $region4: #{conv_bn_relu.2} parent=0 // pred_region
    _
  $region5: #{conv_bn_relu.2} parent=0 // pred_fallthru
    _
  // Predicated region
  $region6: #{conv_bn_relu.2} parent=0 // pred_check
    _
  $region7: #{conv_bn_relu.2} parent=0 // pred_check_branch
    %12 = sbr.rel (0) target = $region9
  $region8: #{conv_bn_relu.2} parent=0 // pred_region
    _
  $region9: #{conv_bn_relu.2} parent=0 // pred_fallthru
    _
  %v14 = vld [vmem:[%s0] sm:$0xf]
  %v15 = vld [vmem:[%s0 + $0x4] sm:$0xf]
  %v16 = vld [vmem:[%s0 + $0x8] sm:$0xf]
  %v17 = vld [vmem:[%s0 + $0xc] sm:$0xf]
  %v18 = vld [vmem:[%s0 + $0x10] sm:$0xf]
  %v19 = vld [vmem:[%s0 + $0x14] sm:$0xf]
  %v20 = vld [vmem:[%s0 + $0x18] sm:$0xf]
  %v21 = vld [vmem:[%s0 + $0x1c] sm:$0xf]
  %v22 = vld [vmem:[%s0 + $0x20] sm:$0xf]
  %v23 = vld [vmem:[%s0 + $0x24] sm:$0xf]
  %v24 = vld [vmem:[%s0 + $0x28] sm:$0xf]
  %v25 = vld [vmem:[%s0 + $0x2c] sm:$0xf]
  %v26 = vld [vmem:[%s0 + $0x30] sm:$0xf]
  %v27 = vld [vmem:[%s0 + $0x34] sm:$0xf]
  %v28 = vld [vmem:[%s0 + $0x38] sm:$0xf]
  %v29 = vld [vmem:[%s0 + $0x3c] sm:$0xf]
  %v30 = vld [vmem:[%s0 + $0x40] sm:$0xf]
  %v31 = vld [vmem:[%s0 + $0x44] sm:$0xf]
  %v32 = vld [vmem:[%s0 + $0x48] sm:$0xf]
  %v33 = vld [vmem:[%s0 + $0x4c] sm:$0xf]
  %v34 = vld [vmem:[%s0 + $0x50] sm:$0xf]
  %v35 = vld [vmem:[%s0 + $0x54] sm:$0xf]
  %v36 = vld [vmem:[%s0 + $0x58] sm:$0xf]
  %v37 = vld [vmem:[%s0 + $0x5c] sm:$0xf]
  %v38 = vld [vmem:[%s0 + $0x60] sm:$0xf]
  %v39 = vld [vmem:[%s0 + $0x64] sm:$0xf]
  %v40 = vld [vmem:[%s0 + $0x68] sm:$0xf]
  %v41 = vld [vmem:[%s0 + $0x6c] sm:$0xf]
  %v42 = vld [vmem:[%s0 + $0x70] sm:$0xf]
  %v43 = vld [vmem:[%s0 + $0x74] sm:$0xf]
  %v44 = vld [vmem:[%s0 + $0x78] sm:$0xf]
  %v45 = vld [vmem:[%s0 + $0x7c] sm:$0xf]
  %v46 = vld [vmem:[%s0 + $0x80] sm:$0xf]
  %v47 = vld [vmem:[%s0 + $0x84] sm:$0xf]
  %v48 = vld [vmem:[%s0 + $0x88] sm:$0xf]
  %v49 = vld [vmem:[%s0 + $0x8c] sm:$0xf]
  %v50 = vld [vmem:[%s0 + $0x90] sm:$0xf]
  %v51 = vld [vmem:[%s0 + $0x94] sm:$0xf]
  %v52 = vld [vmem:[%s0 + $0x98] sm:$0xf]
  %v53 = vld [vmem:[%s0 + $0x9c] sm:$0xf]
  %v54 = vld [vmem:[%s0 + $0xa0] sm:$0xf]
  %v55 = vld [vmem:[%s0 + $0xa4] sm:$0xf]
  %v56 = vld [vmem:[%s0 + $0xa8] sm:$0xf]
  %v57 = vld [vmem:[%s0 + $0xac] sm:$0xf]
  %v58 = vld [vmem:[%s0 + $0xb0] sm:$0xf]
  %v59 = vld [vmem:[%s0 + $0xb4] sm:$0xf]
  %v60 = vld [vmem:[%s0 + $0xb8] sm:$0xf]
  %v61 = vld [vmem:[%s0 + $0xbc] sm:$0xf]
  %v62 = vld [vmem:[%s0 + $0xc0] sm:$0xf]
  %v63 = vld [vmem:[%s0 + $0xc4] sm:$0xf]
  %v64 = vld [vmem:[%s0 + $0xc8] sm:$0xf]
  %v65 = vld [vmem:[%s0 + $0xcc] sm:$0xf]
  %v66 = vld [vmem:[%s0 + $0xd0] sm:$0xf]
  %v67 = vld [vmem:[%s0 + $0xd4] sm:$0xf]
  %v68 = vld [vmem:[%s0 + $0xd8] sm:$0xf]
  %v69 = vld [vmem:[%s0 + $0xdc] sm:$0xf]
  %v70 = vld [vmem:[%s0 + $0xe0] sm:$0xf]
  %v71 = vld [vmem:[%s0 + $0xe4] sm:$0xf]
  %v72 = vld [vmem:[%s0 + $0xe8] sm:$0xf]
  %v73 = vld [vmem:[%s0 + $0xec] sm:$0xf]
  %v74 = vld [vmem:[%s0 + $0xf0] sm:$0xf]
  %v75 = vld [vmem:[%s0 + $0xf4] sm:$0xf]
  %v76 = vld [vmem:[%s0 + $0xf8] sm:$0xf]
  %v77 = vld [vmem:[%s0 + $0xfc] sm:$0xf]
  %v78 = vld [vmem:[%s1] sm:$0xf]
  %v79 = vld [vmem:[%s1 + $0x4] sm:$0xf]
  %v80 = vld [vmem:[%s1 + $0x8] sm:$0xf]
  %v81 = vld [vmem:[%s1 + $0xc] sm:$0xf]
  %v82 = vld [vmem:[%s1 + $0x10] sm:$0x3]
  %v147 = vunpack.c.l.b16 %v14
  %v148 = vunpack.c.l.b16 %v15
  %v149 = vunpack.c.l.b16 %v16
  %v150 = vunpack.c.l.b16 %v17
  %v151 = vunpack.c.l.b16 %v18
  %v152 = vunpack.c.l.b16 %v19
  %v153 = vunpack.c.l.b16 %v20
  %v154 = vunpack.c.l.b16 %v21
  %v155 = vunpack.c.l.b16 %v22
  %v156 = vunpack.c.l.b16 %v23
  %v157 = vunpack.c.l.b16 %v24
  %v158 = vunpack.c.l.b16 %v25
  %v159 = vunpack.c.l.b16 %v26
  %v160 = vunpack.c.l.b16 %v27
  %v161 = vunpack.c.l.b16 %v28
  %v162 = vunpack.c.l.b16 %v29
  %v163 = vunpack.c.l.b16 %v30
  %v164 = vunpack.c.l.b16 %v31
  %v165 = vunpack.c.l.b16 %v32
  %v166 = vunpack.c.l.b16 %v33
  %v167 = vunpack.c.l.b16 %v34
  %v168 = vunpack.c.l.b16 %v35
  %v169 = vunpack.c.l.b16 %v36
  %v170 = vunpack.c.l.b16 %v37
  %v171 = vunpack.c.l.b16 %v38
  %v172 = vunpack.c.l.b16 %v39
  %v173 = vunpack.c.l.b16 %v40
  %v174 = vunpack.c.l.b16 %v41
  %v175 = vunpack.c.l.b16 %v42
  %v176 = vunpack.c.l.b16 %v43
  %v177 = vunpack.c.l.b16 %v44
  %v178 = vunpack.c.l.b16 %v45
  %v179 = vunpack.c.l.b16 %v46
  %v180 = vunpack.c.l.b16 %v47
  %v181 = vunpack.c.l.b16 %v48
  %v182 = vunpack.c.l.b16 %v49
  %v183 = vunpack.c.l.b16 %v50
  %v184 = vunpack.c.l.b16 %v51
  %v185 = vunpack.c.l.b16 %v52
  %v186 = vunpack.c.l.b16 %v53
  %v187 = vunpack.c.l.b16 %v54
  %v188 = vunpack.c.l.b16 %v55
  %v189 = vunpack.c.l.b16 %v56
  %v190 = vunpack.c.l.b16 %v57
  %v191 = vunpack.c.l.b16 %v58
  %v192 = vunpack.c.l.b16 %v59
  %v193 = vunpack.c.l.b16 %v60
  %v194 = vunpack.c.l.b16 %v61
  %v195 = vunpack.c.l.b16 %v62
  %v196 = vunpack.c.l.b16 %v63
  %v197 = vunpack.c.l.b16 %v64
  %v198 = vunpack.c.l.b16 %v65
  %v199 = vunpack.c.l.b16 %v66
  %v200 = vunpack.c.l.b16 %v67
  %v201 = vunpack.c.l.b16 %v68
  %v202 = vunpack.c.l.b16 %v69
  %v203 = vunpack.c.l.b16 %v70
  %v204 = vunpack.c.l.b16 %v71
  %v205 = vunpack.c.l.b16 %v72
  %v206 = vunpack.c.l.b16 %v73
  %v207 = vunpack.c.l.b16 %v74
  %v208 = vunpack.c.l.b16 %v75
  %v209 = vunpack.c.l.b16 %v76
  %v210 = vunpack.c.l.b16 %v77
  %v211 = vpack.c.b16 %v148, %v147
  %v212 = vpack.c.b16 %v150, %v149
  %v213 = vpack.c.b16 %v152, %v151
  %v214 = vpack.c.b16 %v154, %v153
  %v215 = vpack.c.b16 %v156, %v155
  %v216 = vpack.c.b16 %v158, %v157
  %v217 = vpack.c.b16 %v160, %v159
  %v218 = vpack.c.b16 %v162, %v161
  %v219 = vpack.c.b16 %v164, %v163
  %v220 = vpack.c.b16 %v166, %v165
  %v221 = vpack.c.b16 %v168, %v167
  %v222 = vpack.c.b16 %v170, %v169
  %v223 = vpack.c.b16 %v172, %v171
  %v224 = vpack.c.b16 %v174, %v173
  %v225 = vpack.c.b16 %v176, %v175
  %v226 = vpack.c.b16 %v178, %v177
  %v227 = vpack.c.b16 %v180, %v179
  %v228 = vpack.c.b16 %v182, %v181
  %v229 = vpack.c.b16 %v184, %v183
  %v230 = vpack.c.b16 %v186, %v185
  %v231 = vpack.c.b16 %v188, %v187
  %v232 = vpack.c.b16 %v190, %v189
  %v233 = vpack.c.b16 %v192, %v191
  %v234 = vpack.c.b16 %v194, %v193
  %v235 = vpack.c.b16 %v196, %v195
  %v236 = vpack.c.b16 %v198, %v197
  %v237 = vpack.c.b16 %v200, %v199
  %v238 = vpack.c.b16 %v202, %v201
  %v239 = vpack.c.b16 %v204, %v203
  %v240 = vpack.c.b16 %v206, %v205
  %v241 = vpack.c.b16 %v208, %v207
  %v242 = vpack.c.b16 %v210, %v209
  %v248 = vunpack.c.l.b16 %v78
  %v249 = vunpack.c.l.b16 %v79
  %v250 = vunpack.c.l.b16 %v80
  %v251 = vunpack.c.l.b16 %v81
  %v252 = vunpack.c.l.b16 %v82
  %v253 = vpack.c.b16 %v249, %v248
  %v254 = vpack.c.b16 %v251, %v250
  %v255 = vpack.c.b16 %v252, %v252
  %vm258 = vcmask 293888
  %v260 = vsel %vm258, %v211, 0
  %v263 = vsel %vm258, %v212, 0
  %v266 = vsel %vm258, %v213, 0
  %v269 = vsel %vm258, %v214, 0
  %v272 = vsel %vm258, %v215, 0
  %v275 = vsel %vm258, %v216, 0
  %v278 = vsel %vm258, %v217, 0
  %v281 = vsel %vm258, %v218, 0
  %v284 = vsel %vm258, %v219, 0
  %v287 = vsel %vm258, %v220, 0
  %v290 = vsel %vm258, %v221, 0
  %v293 = vsel %vm258, %v222, 0
  %v296 = vsel %vm258, %v223, 0
  %v299 = vsel %vm258, %v224, 0
  %v302 = vsel %vm258, %v225, 0
  %v305 = vsel %vm258, %v226, 0
  %v308 = vsel %vm258, %v227, 0
  %v311 = vsel %vm258, %v228, 0
  %v314 = vsel %vm258, %v229, 0
  %v317 = vsel %vm258, %v230, 0
  %v320 = vsel %vm258, %v231, 0
  %v323 = vsel %vm258, %v232, 0
  %v326 = vsel %vm258, %v233, 0
  %v329 = vsel %vm258, %v234, 0
  %v332 = vsel %vm258, %v235, 0
  %v335 = vsel %vm258, %v236, 0
  %v338 = vsel %vm258, %v237, 0
  %v341 = vsel %vm258, %v238, 0
  %v344 = vsel %vm258, %v239, 0
  %v347 = vsel %vm258, %v240, 0
  %v350 = vsel %vm258, %v241, 0
  %v353 = vsel %vm258, %v242, 0
  %vm355 = vcmask 1041408
  %v357 = vsel %vm355, %v255, 0
  %359 = vmatprep.subr.bf16.mxu0 0
  %360 = vmatpush1.bf16.msra.mxu0 0
  %361 = vmatprep.subr.bf16.mxu0 0
  %362 = vmatpush1.bf16.msra.mxu0 0
  %363 = vmatprep.subr.bf16.mxu0 0
  %364 = vmatpush1.bf16.msra.mxu0 0
  %365 = vmatprep.subr.bf16.mxu0 0
  %366 = vmatpush1.bf16.msra.mxu0 0
  %367 = vmatprep.subr.bf16.mxu0 0
  %368 = vmatpush1.bf16.msra.mxu0 0
  %369 = vmatprep.subr.bf16.mxu0 0
  %370 = vmatpush1.bf16.msra.mxu0 %v357
  %371 = vmatprep.subr.bf16.mxu0 0
  %372 = vmatpush1.bf16.msra.mxu0 %v254
  %373 = vmatprep.subr.bf16.mxu0 0
  %374 = vmatpush1.bf16.msra.mxu0 %v253
  %375 = vmatprep.subr.bf16.mxu0 0
  %376 = vmatpush2.bf16.msra.mxu0 0
  %377 = vmatprep.subr.bf16.mxu0 0
  %378 = vmatpush2.bf16.msra.mxu0 0
  %379 = vmatprep.subr.bf16.mxu0 0
  %380 = vmatpush2.bf16.msra.mxu0 0
  %381 = vmatprep.subr.bf16.mxu0 0
  %382 = vmatpush2.bf16.msra.mxu0 0
  %383 = vmatprep.subr.bf16.mxu0 0
  %384 = vmatpush2.bf16.msra.mxu0 0
  %385 = vmatprep.subr.bf16.mxu0 0
  %386 = vmatpush2.bf16.msra.mxu0 0
  %387 = vmatprep.subr.bf16.mxu0 0
  %388 = vmatpush2.bf16.msra.mxu0 0
  %389 = vmatprep.subr.bf16.mxu0 0
  %390 = vmatpush2.bf16.msra.mxu0 0
  %391 = vmatprep.mubr.bf16.mxu0 0
  %392 = vmatmul.mubr.bf16.gmra.mxu0 %v260
  %v393 = vpop.f32.mrf.mxu0
  %v394 = vadd.f32 0.0, %v393
  %v395 = vpop.f32.mrf.mxu0
  %v396 = vpop.f32.mrf.mxu0
  %v397 = vadd.f32 0.0, %v396
  %v398 = vpop.f32.mrf.mxu0
  %399 = vmatprep.mubr.bf16.mxu0 0
  %400 = vmatmul.mubr.bf16.gmra.mxu0 %v263
  %v401 = vpop.f32.mrf.mxu0
  %v402 = vadd.f32 0.0, %v401
  %v403 = vpop.f32.mrf.mxu0
  %v404 = vpop.f32.mrf.mxu0
  %v405 = vadd.f32 0.0, %v404
  %v406 = vpop.f32.mrf.mxu0
  %407 = vmatprep.mubr.bf16.mxu0 0
  %408 = vmatmul.mubr.bf16.gmra.mxu0 %v266
  %v409 = vpop.f32.mrf.mxu0
  %v410 = vadd.f32 0.0, %v409
  %v411 = vpop.f32.mrf.mxu0
  %v412 = vpop.f32.mrf.mxu0
  %v413 = vadd.f32 0.0, %v412
  %v414 = vpop.f32.mrf.mxu0
  %415 = vmatprep.mubr.bf16.mxu0 0
  %416 = vmatmul.mubr.bf16.gmra.mxu0 %v269
  %v417 = vpop.f32.mrf.mxu0
  %v418 = vadd.f32 0.0, %v417
  %v419 = vpop.f32.mrf.mxu0
  %v420 = vpop.f32.mrf.mxu0
  %v421 = vadd.f32 0.0, %v420
  %v422 = vpop.f32.mrf.mxu0
  %423 = vmatprep.mubr.bf16.mxu0 0
  %424 = vmatmul.mubr.bf16.gmra.mxu0 %v272
  %v425 = vpop.f32.mrf.mxu0
  %v426 = vadd.f32 0.0, %v425
  %v427 = vpop.f32.mrf.mxu0
  %v428 = vpop.f32.mrf.mxu0
  %v429 = vadd.f32 0.0, %v428
  %v430 = vpop.f32.mrf.mxu0
  %431 = vmatprep.mubr.bf16.mxu0 0
  %432 = vmatmul.mubr.bf16.gmra.mxu0 %v275
  %v433 = vpop.f32.mrf.mxu0
  %v434 = vadd.f32 0.0, %v433
  %v435 = vpop.f32.mrf.mxu0
  %v436 = vpop.f32.mrf.mxu0
  %v437 = vadd.f32 0.0, %v436
  %v438 = vpop.f32.mrf.mxu0
  %439 = vmatprep.mubr.bf16.mxu0 0
  %440 = vmatmul.mubr.bf16.gmra.mxu0 %v278
  %v441 = vpop.f32.mrf.mxu0
  %v442 = vadd.f32 0.0, %v441
  %v443 = vpop.f32.mrf.mxu0
  %v444 = vpop.f32.mrf.mxu0
  %v445 = vadd.f32 0.0, %v444
  %v446 = vpop.f32.mrf.mxu0
  %447 = vmatprep.mubr.bf16.mxu0 0
  %448 = vmatmul.mubr.bf16.gmra.mxu0 %v281
  %v449 = vpop.f32.mrf.mxu0
  %v450 = vadd.f32 0.0, %v449
  %v451 = vpop.f32.mrf.mxu0
  %v452 = vpop.f32.mrf.mxu0
  %v453 = vadd.f32 0.0, %v452
  %v454 = vpop.f32.mrf.mxu0
  %455 = vmatprep.mubr.bf16.mxu0 0
  %456 = vmatmul.mubr.bf16.gmra.mxu0 %v284
  %v457 = vpop.f32.mrf.mxu0
  %v458 = vadd.f32 0.0, %v457
  %v459 = vpop.f32.mrf.mxu0
  %v460 = vpop.f32.mrf.mxu0
  %v461 = vadd.f32 0.0, %v460
  %v462 = vpop.f32.mrf.mxu0
  %463 = vmatprep.mubr.bf16.mxu0 0
  %464 = vmatmul.mubr.bf16.gmra.mxu0 %v287
  %v465 = vpop.f32.mrf.mxu0
  %v466 = vadd.f32 0.0, %v465
  %v467 = vpop.f32.mrf.mxu0
  %v468 = vpop.f32.mrf.mxu0
  %v469 = vadd.f32 0.0, %v468
  %v470 = vpop.f32.mrf.mxu0
  %471 = vmatprep.mubr.bf16.mxu0 0
  %472 = vmatmul.mubr.bf16.gmra.mxu0 %v290
  %v473 = vpop.f32.mrf.mxu0
  %v474 = vadd.f32 0.0, %v473
  %v475 = vpop.f32.mrf.mxu0
  %v476 = vpop.f32.mrf.mxu0
  %v477 = vadd.f32 0.0, %v476
  %v478 = vpop.f32.mrf.mxu0
  %479 = vmatprep.mubr.bf16.mxu0 0
  %480 = vmatmul.mubr.bf16.gmra.mxu0 %v293
  %v481 = vpop.f32.mrf.mxu0
  %v482 = vadd.f32 0.0, %v481
  %v483 = vpop.f32.mrf.mxu0
  %v484 = vpop.f32.mrf.mxu0
  %v485 = vadd.f32 0.0, %v484
  %v486 = vpop.f32.mrf.mxu0
  %487 = vmatprep.mubr.bf16.mxu0 0
  %488 = vmatmul.mubr.bf16.gmra.mxu0 %v296
  %v489 = vpop.f32.mrf.mxu0
  %v490 = vadd.f32 0.0, %v489
  %v491 = vpop.f32.mrf.mxu0
  %v492 = vpop.f32.mrf.mxu0
  %v493 = vadd.f32 0.0, %v492
  %v494 = vpop.f32.mrf.mxu0
  %495 = vmatprep.mubr.bf16.mxu0 0
  %496 = vmatmul.mubr.bf16.gmra.mxu0 %v299
  %v497 = vpop.f32.mrf.mxu0
  %v498 = vadd.f32 0.0, %v497
  %v499 = vpop.f32.mrf.mxu0
  %v500 = vpop.f32.mrf.mxu0
  %v501 = vadd.f32 0.0, %v500
  %v502 = vpop.f32.mrf.mxu0
  %503 = vmatprep.mubr.bf16.mxu0 0
  %504 = vmatmul.mubr.bf16.gmra.mxu0 %v302
  %v505 = vpop.f32.mrf.mxu0
  %v506 = vadd.f32 0.0, %v505
  %v507 = vpop.f32.mrf.mxu0
  %v508 = vpop.f32.mrf.mxu0
  %v509 = vadd.f32 0.0, %v508
  %v510 = vpop.f32.mrf.mxu0
  %511 = vmatprep.mubr.bf16.mxu0 0
  %512 = vmatmul.mubr.bf16.gmra.mxu0 %v305
  %v513 = vpop.f32.mrf.mxu0
  %v514 = vadd.f32 0.0, %v513
  %v515 = vpop.f32.mrf.mxu0
  %v516 = vpop.f32.mrf.mxu0
  %v517 = vadd.f32 0.0, %v516
  %v518 = vpop.f32.mrf.mxu0
  %519 = vmatprep.mubr.bf16.mxu0 0
  %520 = vmatmul.mubr.bf16.gmra.mxu0 %v308
  %v521 = vpop.f32.mrf.mxu0
  %v522 = vadd.f32 0.0, %v521
  %v523 = vpop.f32.mrf.mxu0
  %v524 = vpop.f32.mrf.mxu0
  %v525 = vadd.f32 0.0, %v524
  %v526 = vpop.f32.mrf.mxu0
  %527 = vmatprep.mubr.bf16.mxu0 0
  %528 = vmatmul.mubr.bf16.gmra.mxu0 %v311
  %v529 = vpop.f32.mrf.mxu0
  %v530 = vadd.f32 0.0, %v529
  %v531 = vpop.f32.mrf.mxu0
  %v532 = vpop.f32.mrf.mxu0
  %v533 = vadd.f32 0.0, %v532
  %v534 = vpop.f32.mrf.mxu0
  %535 = vmatprep.mubr.bf16.mxu0 0
  %536 = vmatmul.mubr.bf16.gmra.mxu0 %v314
  %v537 = vpop.f32.mrf.mxu0
  %v538 = vadd.f32 0.0, %v537
  %v539 = vpop.f32.mrf.mxu0
  %v540 = vpop.f32.mrf.mxu0
  %v541 = vadd.f32 0.0, %v540
  %v542 = vpop.f32.mrf.mxu0
  %543 = vmatprep.mubr.bf16.mxu0 0
  %544 = vmatmul.mubr.bf16.gmra.mxu0 %v317
  %v545 = vpop.f32.mrf.mxu0
  %v546 = vadd.f32 0.0, %v545
  %v547 = vpop.f32.mrf.mxu0
  %v548 = vpop.f32.mrf.mxu0
  %v549 = vadd.f32 0.0, %v548
  %v550 = vpop.f32.mrf.mxu0
  %551 = vmatprep.mubr.bf16.mxu0 0
  %552 = vmatmul.mubr.bf16.gmra.mxu0 %v320
  %v553 = vpop.f32.mrf.mxu0
  %v554 = vadd.f32 0.0, %v553
  %v555 = vpop.f32.mrf.mxu0
  %v556 = vpop.f32.mrf.mxu0
  %v557 = vadd.f32 0.0, %v556
  %v558 = vpop.f32.mrf.mxu0
  %559 = vmatprep.mubr.bf16.mxu0 0
  %560 = vmatmul.mubr.bf16.gmra.mxu0 %v323
  %v561 = vpop.f32.mrf.mxu0
  %v562 = vadd.f32 0.0, %v561
  %v563 = vpop.f32.mrf.mxu0
  %v564 = vpop.f32.mrf.mxu0
  %v565 = vadd.f32 0.0, %v564
  %v566 = vpop.f32.mrf.mxu0
  %567 = vmatprep.mubr.bf16.mxu0 0
  %568 = vmatmul.mubr.bf16.gmra.mxu0 %v326
  %v569 = vpop.f32.mrf.mxu0
  %v570 = vadd.f32 0.0, %v569
  %v571 = vpop.f32.mrf.mxu0
  %v572 = vpop.f32.mrf.mxu0
  %v573 = vadd.f32 0.0, %v572
  %v574 = vpop.f32.mrf.mxu0
  %575 = vmatprep.mubr.bf16.mxu0 0
  %576 = vmatmul.mubr.bf16.gmra.mxu0 %v329
  %v577 = vpop.f32.mrf.mxu0
  %v578 = vadd.f32 0.0, %v577
  %v579 = vpop.f32.mrf.mxu0
  %v580 = vpop.f32.mrf.mxu0
  %v581 = vadd.f32 0.0, %v580
  %v582 = vpop.f32.mrf.mxu0
  %583 = vmatprep.mubr.bf16.mxu0 0
  %584 = vmatmul.mubr.bf16.gmra.mxu0 %v332
  %v585 = vpop.f32.mrf.mxu0
  %v586 = vadd.f32 0.0, %v585
  %v587 = vpop.f32.mrf.mxu0
  %v588 = vpop.f32.mrf.mxu0
  %v589 = vadd.f32 0.0, %v588
  %v590 = vpop.f32.mrf.mxu0
  %591 = vmatprep.mubr.bf16.mxu0 0
  %592 = vmatmul.mubr.bf16.gmra.mxu0 %v335
  %v593 = vpop.f32.mrf.mxu0
  %v594 = vadd.f32 0.0, %v593
  %v595 = vpop.f32.mrf.mxu0
  %v596 = vpop.f32.mrf.mxu0
  %v597 = vadd.f32 0.0, %v596
  %v598 = vpop.f32.mrf.mxu0
  %599 = vmatprep.mubr.bf16.mxu0 0
  %600 = vmatmul.mubr.bf16.gmra.mxu0 %v338
  %v601 = vpop.f32.mrf.mxu0
  %v602 = vadd.f32 0.0, %v601
  %v603 = vpop.f32.mrf.mxu0
  %v604 = vpop.f32.mrf.mxu0
  %v605 = vadd.f32 0.0, %v604
  %v606 = vpop.f32.mrf.mxu0
  %607 = vmatprep.mubr.bf16.mxu0 0
  %608 = vmatmul.mubr.bf16.gmra.mxu0 %v341
  %v609 = vpop.f32.mrf.mxu0
  %v610 = vadd.f32 0.0, %v609
  %v611 = vpop.f32.mrf.mxu0
  %v612 = vpop.f32.mrf.mxu0
  %v613 = vadd.f32 0.0, %v612
  %v614 = vpop.f32.mrf.mxu0
  %615 = vmatprep.mubr.bf16.mxu0 0
  %616 = vmatmul.mubr.bf16.gmra.mxu0 %v344
  %v617 = vpop.f32.mrf.mxu0
  %v618 = vadd.f32 0.0, %v617
  %v619 = vpop.f32.mrf.mxu0
  %v620 = vpop.f32.mrf.mxu0
  %v621 = vadd.f32 0.0, %v620
  %v622 = vpop.f32.mrf.mxu0
  %623 = vmatprep.mubr.bf16.mxu0 0
  %624 = vmatmul.mubr.bf16.gmra.mxu0 %v347
  %v625 = vpop.f32.mrf.mxu0
  %v626 = vadd.f32 0.0, %v625
  %v627 = vpop.f32.mrf.mxu0
  %v628 = vpop.f32.mrf.mxu0
  %v629 = vadd.f32 0.0, %v628
  %v630 = vpop.f32.mrf.mxu0
  %631 = vmatprep.mubr.bf16.mxu0 0
  %632 = vmatmul.mubr.bf16.gmra.mxu0 %v350
  %v633 = vpop.f32.mrf.mxu0
  %v634 = vadd.f32 0.0, %v633
  %v635 = vpop.f32.mrf.mxu0
  %v636 = vpop.f32.mrf.mxu0
  %v637 = vadd.f32 0.0, %v636
  %v638 = vpop.f32.mrf.mxu0
  %639 = vmatprep.mubr.bf16.mxu0 0
  %640 = vmatmul.mubr.bf16.gmra.mxu0 %v353
  %v641 = vpop.f32.mrf.mxu0
  %v642 = vadd.f32 0.0, %v641
  %v643 = vpop.f32.mrf.mxu0
  %v644 = vpop.f32.mrf.mxu0
  %v645 = vadd.f32 0.0, %v644
  %v646 = vpop.f32.mrf.mxu0
  %647 = vdwg.mxu0
  %v648 = vpack.c.bf16 %v397, %v394
  %v649 = vpack.c.bf16 %v405, %v402
  %v650 = vpack.c.bf16 %v413, %v410
  %v651 = vpack.c.bf16 %v421, %v418
  %v652 = vpack.c.bf16 %v429, %v426
  %v653 = vpack.c.bf16 %v437, %v434
  %v654 = vpack.c.bf16 %v445, %v442
  %v655 = vpack.c.bf16 %v453, %v450
  %v656 = vpack.c.bf16 %v461, %v458
  %v657 = vpack.c.bf16 %v469, %v466
  %v658 = vpack.c.bf16 %v477, %v474
  %v659 = vpack.c.bf16 %v485, %v482
  %v660 = vpack.c.bf16 %v493, %v490
  %v661 = vpack.c.bf16 %v501, %v498
  %v662 = vpack.c.bf16 %v509, %v506
  %v663 = vpack.c.bf16 %v517, %v514
  %v664 = vpack.c.bf16 %v525, %v522
  %v665 = vpack.c.bf16 %v533, %v530
  %v666 = vpack.c.bf16 %v541, %v538
  %v667 = vpack.c.bf16 %v549, %v546
  %v668 = vpack.c.bf16 %v557, %v554
  %v669 = vpack.c.bf16 %v565, %v562
  %v670 = vpack.c.bf16 %v573, %v570
  %v671 = vpack.c.bf16 %v581, %v578
  %v672 = vpack.c.bf16 %v589, %v586
  %v673 = vpack.c.bf16 %v597, %v594
  %v674 = vpack.c.bf16 %v605, %v602
  %v675 = vpack.c.bf16 %v613, %v610
  %v676 = vpack.c.bf16 %v621, %v618
  %v677 = vpack.c.bf16 %v629, %v626
  %v678 = vpack.c.bf16 %v637, %v634
  %v679 = vpack.c.bf16 %v645, %v642
  %v712 = vunpack.c.l.b16 %v648
  %v713 = vunpack.c.h.b16 %v648
  %v714 = vunpack.c.l.b16 %v649
  %v715 = vunpack.c.h.b16 %v649
  %v716 = vunpack.c.l.b16 %v650
  %v717 = vunpack.c.h.b16 %v650
  %v718 = vunpack.c.l.b16 %v651
  %v719 = vunpack.c.h.b16 %v651
  %v720 = vunpack.c.l.b16 %v652
  %v721 = vunpack.c.h.b16 %v652
  %v722 = vunpack.c.l.b16 %v653
  %v723 = vunpack.c.h.b16 %v653
  %v724 = vunpack.c.l.b16 %v654
  %v725 = vunpack.c.h.b16 %v654
  %v726 = vunpack.c.l.b16 %v655
  %v727 = vunpack.c.h.b16 %v655
  %v728 = vunpack.c.l.b16 %v656
  %v729 = vunpack.c.h.b16 %v656
  %v730 = vunpack.c.l.b16 %v657
  %v731 = vunpack.c.h.b16 %v657
  %v732 = vunpack.c.l.b16 %v658
  %v733 = vunpack.c.h.b16 %v658
  %v734 = vunpack.c.l.b16 %v659
  %v735 = vunpack.c.h.b16 %v659
  %v736 = vunpack.c.l.b16 %v660
  %v737 = vunpack.c.h.b16 %v660
  %v738 = vunpack.c.l.b16 %v661
  %v739 = vunpack.c.h.b16 %v661
  %v740 = vunpack.c.l.b16 %v662
  %v741 = vunpack.c.h.b16 %v662
  %v742 = vunpack.c.l.b16 %v663
  %v743 = vunpack.c.h.b16 %v663
  %v744 = vunpack.c.l.b16 %v664
  %v745 = vunpack.c.h.b16 %v664
  %v746 = vunpack.c.l.b16 %v665
  %v747 = vunpack.c.h.b16 %v665
  %v748 = vunpack.c.l.b16 %v666
  %v749 = vunpack.c.h.b16 %v666
  %v750 = vunpack.c.l.b16 %v667
  %v751 = vunpack.c.h.b16 %v667
  %v752 = vunpack.c.l.b16 %v668
  %v753 = vunpack.c.h.b16 %v668
  %v754 = vunpack.c.l.b16 %v669
  %v755 = vunpack.c.h.b16 %v669
  %v756 = vunpack.c.l.b16 %v670
  %v757 = vunpack.c.h.b16 %v670
  %v758 = vunpack.c.l.b16 %v671
  %v759 = vunpack.c.h.b16 %v671
  %v760 = vunpack.c.l.b16 %v672
  %v761 = vunpack.c.h.b16 %v672
  %v762 = vunpack.c.l.b16 %v673
  %v763 = vunpack.c.h.b16 %v673
  %v764 = vunpack.c.l.b16 %v674
  %v765 = vunpack.c.h.b16 %v674
  %v766 = vunpack.c.l.b16 %v675
  %v767 = vunpack.c.h.b16 %v675
  %v768 = vunpack.c.l.b16 %v676
  %v769 = vunpack.c.h.b16 %v676
  %v770 = vunpack.c.l.b16 %v677
  %v771 = vunpack.c.h.b16 %v677
  %v772 = vunpack.c.l.b16 %v678
  %v773 = vunpack.c.h.b16 %v678
  %v774 = vunpack.c.l.b16 %v679
  %v775 = vunpack.c.h.b16 %v679
  %v776 = vpack.c.b16 %v712, %v712
  %v777 = vpack.c.b16 %v713, %v713
  %v778 = vpack.c.b16 %v714, %v714
  %v779 = vpack.c.b16 %v715, %v715
  %v780 = vpack.c.b16 %v716, %v716
  %v781 = vpack.c.b16 %v717, %v717
  %v782 = vpack.c.b16 %v718, %v718
  %v783 = vpack.c.b16 %v719, %v719
  %v784 = vpack.c.b16 %v720, %v720
  %v785 = vpack.c.b16 %v721, %v721
  %v786 = vpack.c.b16 %v722, %v722
  %v787 = vpack.c.b16 %v723, %v723
  %v788 = vpack.c.b16 %v724, %v724
  %v789 = vpack.c.b16 %v725, %v725
  %v790 = vpack.c.b16 %v726, %v726
  %v791 = vpack.c.b16 %v727, %v727
  %v792 = vpack.c.b16 %v728, %v728
  %v793 = vpack.c.b16 %v729, %v729
  %v794 = vpack.c.b16 %v730, %v730
  %v795 = vpack.c.b16 %v731, %v731
  %v796 = vpack.c.b16 %v732, %v732
  %v797 = vpack.c.b16 %v733, %v733
  %v798 = vpack.c.b16 %v734, %v734
  %v799 = vpack.c.b16 %v735, %v735
  %v800 = vpack.c.b16 %v736, %v736
  %v801 = vpack.c.b16 %v737, %v737
  %v802 = vpack.c.b16 %v738, %v738
  %v803 = vpack.c.b16 %v739, %v739
  %v804 = vpack.c.b16 %v740, %v740
  %v805 = vpack.c.b16 %v741, %v741
  %v806 = vpack.c.b16 %v742, %v742
  %v807 = vpack.c.b16 %v743, %v743
  %v808 = vpack.c.b16 %v744, %v744
  %v809 = vpack.c.b16 %v745, %v745
  %v810 = vpack.c.b16 %v746, %v746
  %v811 = vpack.c.b16 %v747, %v747
  %v812 = vpack.c.b16 %v748, %v748
  %v813 = vpack.c.b16 %v749, %v749
  %v814 = vpack.c.b16 %v750, %v750
  %v815 = vpack.c.b16 %v751, %v751
  %v816 = vpack.c.b16 %v752, %v752
  %v817 = vpack.c.b16 %v753, %v753
  %v818 = vpack.c.b16 %v754, %v754
  %v819 = vpack.c.b16 %v755, %v755
  %v820 = vpack.c.b16 %v756, %v756
  %v821 = vpack.c.b16 %v757, %v757
  %v822 = vpack.c.b16 %v758, %v758
  %v823 = vpack.c.b16 %v759, %v759
  %v824 = vpack.c.b16 %v760, %v760
  %v825 = vpack.c.b16 %v761, %v761
  %v826 = vpack.c.b16 %v762, %v762
  %v827 = vpack.c.b16 %v763, %v763
  %v828 = vpack.c.b16 %v764, %v764
  %v829 = vpack.c.b16 %v765, %v765
  %v830 = vpack.c.b16 %v766, %v766
  %v831 = vpack.c.b16 %v767, %v767
  %v832 = vpack.c.b16 %v768, %v768
  %v833 = vpack.c.b16 %v769, %v769
  %v834 = vpack.c.b16 %v770, %v770
  %v835 = vpack.c.b16 %v771, %v771
  %v836 = vpack.c.b16 %v772, %v772
  %v837 = vpack.c.b16 %v773, %v773
  %v838 = vpack.c.b16 %v774, %v774
  %v839 = vpack.c.b16 %v775, %v775
  %vm904 = vcmask 519168
  %905 = vst.msk [vmem:[%s2] sm:$0xf] %vm904, %v776
  %906 = vst.msk [vmem:[%s2 + $0x4] sm:$0xf] %vm904, %v777
  %907 = vst.msk [vmem:[%s2 + $0x8] sm:$0xf] %vm904, %v778
  %908 = vst.msk [vmem:[%s2 + $0xc] sm:$0xf] %vm904, %v779
  %909 = vst.msk [vmem:[%s2 + $0x10] sm:$0xf] %vm904, %v780
  %910 = vst.msk [vmem:[%s2 + $0x14] sm:$0xf] %vm904, %v781
  %911 = vst.msk [vmem:[%s2 + $0x18] sm:$0xf] %vm904, %v782
  %912 = vst.msk [vmem:[%s2 + $0x1c] sm:$0xf] %vm904, %v783
  %913 = vst.msk [vmem:[%s2 + $0x20] sm:$0xf] %vm904, %v784
  %914 = vst.msk [vmem:[%s2 + $0x24] sm:$0xf] %vm904, %v785
  %915 = vst.msk [vmem:[%s2 + $0x28] sm:$0xf] %vm904, %v786
  %916 = vst.msk [vmem:[%s2 + $0x2c] sm:$0xf] %vm904, %v787
  %917 = vst.msk [vmem:[%s2 + $0x30] sm:$0xf] %vm904, %v788
  %918 = vst.msk [vmem:[%s2 + $0x34] sm:$0xf] %vm904, %v789
  %919 = vst.msk [vmem:[%s2 + $0x38] sm:$0xf] %vm904, %v790
  %920 = vst.msk [vmem:[%s2 + $0x3c] sm:$0xf] %vm904, %v791
  %921 = vst.msk [vmem:[%s2 + $0x40] sm:$0xf] %vm904, %v792
  %922 = vst.msk [vmem:[%s2 + $0x44] sm:$0xf] %vm904, %v793
  %923 = vst.msk [vmem:[%s2 + $0x48] sm:$0xf] %vm904, %v794
  %924 = vst.msk [vmem:[%s2 + $0x4c] sm:$0xf] %vm904, %v795
  %925 = vst.msk [vmem:[%s2 + $0x50] sm:$0xf] %vm904, %v796
  %926 = vst.msk [vmem:[%s2 + $0x54] sm:$0xf] %vm904, %v797
  %927 = vst.msk [vmem:[%s2 + $0x58] sm:$0xf] %vm904, %v798
  %928 = vst.msk [vmem:[%s2 + $0x5c] sm:$0xf] %vm904, %v799
  %929 = vst.msk [vmem:[%s2 + $0x60] sm:$0xf] %vm904, %v800
  %930 = vst.msk [vmem:[%s2 + $0x64] sm:$0xf] %vm904, %v801
  %931 = vst.msk [vmem:[%s2 + $0x68] sm:$0xf] %vm904, %v802
  %932 = vst.msk [vmem:[%s2 + $0x6c] sm:$0xf] %vm904, %v803
  %933 = vst.msk [vmem:[%s2 + $0x70] sm:$0xf] %vm904, %v804
  %934 = vst.msk [vmem:[%s2 + $0x74] sm:$0xf] %vm904, %v805
  %935 = vst.msk [vmem:[%s2 + $0x78] sm:$0xf] %vm904, %v806
  %936 = vst.msk [vmem:[%s2 + $0x7c] sm:$0xf] %vm904, %v807
  %937 = vst.msk [vmem:[%s2 + $0x80] sm:$0xf] %vm904, %v808
  %938 = vst.msk [vmem:[%s2 + $0x84] sm:$0xf] %vm904, %v809
  %939 = vst.msk [vmem:[%s2 + $0x88] sm:$0xf] %vm904, %v810
  %940 = vst.msk [vmem:[%s2 + $0x8c] sm:$0xf] %vm904, %v811
  %941 = vst.msk [vmem:[%s2 + $0x90] sm:$0xf] %vm904, %v812
  %942 = vst.msk [vmem:[%s2 + $0x94] sm:$0xf] %vm904, %v813
  %943 = vst.msk [vmem:[%s2 + $0x98] sm:$0xf] %vm904, %v814
  %944 = vst.msk [vmem:[%s2 + $0x9c] sm:$0xf] %vm904, %v815
  %945 = vst.msk [vmem:[%s2 + $0xa0] sm:$0xf] %vm904, %v816
  %946 = vst.msk [vmem:[%s2 + $0xa4] sm:$0xf] %vm904, %v817
  %947 = vst.msk [vmem:[%s2 + $0xa8] sm:$0xf] %vm904, %v818
  %948 = vst.msk [vmem:[%s2 + $0xac] sm:$0xf] %vm904, %v819
  %949 = vst.msk [vmem:[%s2 + $0xb0] sm:$0xf] %vm904, %v820
  %950 = vst.msk [vmem:[%s2 + $0xb4] sm:$0xf] %vm904, %v821
  %951 = vst.msk [vmem:[%s2 + $0xb8] sm:$0xf] %vm904, %v822
  %952 = vst.msk [vmem:[%s2 + $0xbc] sm:$0xf] %vm904, %v823
  %953 = vst.msk [vmem:[%s2 + $0xc0] sm:$0xf] %vm904, %v824
  %954 = vst.msk [vmem:[%s2 + $0xc4] sm:$0xf] %vm904, %v825
  %955 = vst.msk [vmem:[%s2 + $0xc8] sm:$0xf] %vm904, %v826
  %956 = vst.msk [vmem:[%s2 + $0xcc] sm:$0xf] %vm904, %v827
  %957 = vst.msk [vmem:[%s2 + $0xd0] sm:$0xf] %vm904, %v828
  %958 = vst.msk [vmem:[%s2 + $0xd4] sm:$0xf] %vm904, %v829
  %959 = vst.msk [vmem:[%s2 + $0xd8] sm:$0xf] %vm904, %v830
  %960 = vst.msk [vmem:[%s2 + $0xdc] sm:$0xf] %vm904, %v831
  %961 = vst.msk [vmem:[%s2 + $0xe0] sm:$0xf] %vm904, %v832
  %962 = vst.msk [vmem:[%s2 + $0xe4] sm:$0xf] %vm904, %v833
  %963 = vst.msk [vmem:[%s2 + $0xe8] sm:$0xf] %vm904, %v834
  %964 = vst.msk [vmem:[%s2 + $0xec] sm:$0xf] %vm904, %v835
  %965 = vst.msk [vmem:[%s2 + $0xf0] sm:$0xf] %vm904, %v836
  %966 = vst.msk [vmem:[%s2 + $0xf4] sm:$0xf] %vm904, %v837
  %967 = vst.msk [vmem:[%s2 + $0xf8] sm:$0xf] %vm904, %v838
  %968 = vst.msk [vmem:[%s2 + $0xfc] sm:$0xf] %vm904, %v839
  %vm969 = vcmask 523264
  %v970 = vsel %vm969, %v394, 0.0
  %v971 = vsel %vm969, %v397, 0.0
  %v972 = vadd.f32 %v970, %v971
  %v973 = vsel %vm969, %v402, 0.0
  %v974 = vadd.f32 %v972, %v973
  %v975 = vsel %vm969, %v405, 0.0
  %v976 = vadd.f32 %v974, %v975
  %v977 = vsel %vm969, %v410, 0.0
  %v978 = vadd.f32 %v976, %v977
  %v979 = vsel %vm969, %v413, 0.0
  %v980 = vadd.f32 %v978, %v979
  %v981 = vsel %vm969, %v418, 0.0
  %v982 = vadd.f32 %v980, %v981
  %v983 = vsel %vm969, %v421, 0.0
  %v984 = vadd.f32 %v982, %v983
  %v985 = vsel %vm969, %v426, 0.0
  %v986 = vadd.f32 %v984, %v985
  %v987 = vsel %vm969, %v429, 0.0
  %v988 = vadd.f32 %v986, %v987
  %v989 = vsel %vm969, %v434, 0.0
  %v990 = vadd.f32 %v988, %v989
  %v991 = vsel %vm969, %v437, 0.0
  %v992 = vadd.f32 %v990, %v991
  %v993 = vsel %vm969, %v442, 0.0
  %v994 = vadd.f32 %v992, %v993
  %v995 = vsel %vm969, %v445, 0.0
  %v996 = vadd.f32 %v994, %v995
  %v997 = vsel %vm969, %v450, 0.0
  %v998 = vadd.f32 %v996, %v997
  %v999 = vsel %vm969, %v453, 0.0
  %v1000 = vadd.f32 %v998, %v999
  %v1001 = vsel %vm969, %v458, 0.0
  %v1002 = vadd.f32 %v1000, %v1001
  %v1003 = vsel %vm969, %v461, 0.0
  %v1004 = vadd.f32 %v1002, %v1003
  %v1005 = vsel %vm969, %v466, 0.0
  %v1006 = vadd.f32 %v1004, %v1005
  %v1007 = vsel %vm969, %v469, 0.0
  %v1008 = vadd.f32 %v1006, %v1007
  %v1009 = vsel %vm969, %v474, 0.0
  %v1010 = vadd.f32 %v1008, %v1009
  %v1011 = vsel %vm969, %v477, 0.0
  %v1012 = vadd.f32 %v1010, %v1011
  %v1013 = vsel %vm969, %v482, 0.0
  %v1014 = vadd.f32 %v1012, %v1013
  %v1015 = vsel %vm969, %v485, 0.0
  %v1016 = vadd.f32 %v1014, %v1015
  %v1017 = vsel %vm969, %v490, 0.0
  %v1018 = vadd.f32 %v1016, %v1017
  %v1019 = vsel %vm969, %v493, 0.0
  %v1020 = vadd.f32 %v1018, %v1019
  %v1021 = vsel %vm969, %v498, 0.0
  %v1022 = vadd.f32 %v1020, %v1021
  %v1023 = vsel %vm969, %v501, 0.0
  %v1024 = vadd.f32 %v1022, %v1023
  %v1025 = vsel %vm969, %v506, 0.0
  %v1026 = vadd.f32 %v1024, %v1025
  %v1027 = vsel %vm969, %v509, 0.0
  %v1028 = vadd.f32 %v1026, %v1027
  %v1029 = vsel %vm969, %v514, 0.0
  %v1030 = vadd.f32 %v1028, %v1029
  %v1031 = vsel %vm969, %v517, 0.0
  %v1032 = vadd.f32 %v1030, %v1031
  %v1033 = vsel %vm969, %v522, 0.0
  %v1034 = vadd.f32 %v1032, %v1033
  %v1035 = vsel %vm969, %v525, 0.0
  %v1036 = vadd.f32 %v1034, %v1035
  %v1037 = vsel %vm969, %v530, 0.0
  %v1038 = vadd.f32 %v1036, %v1037
  %v1039 = vsel %vm969, %v533, 0.0
  %v1040 = vadd.f32 %v1038, %v1039
  %v1041 = vsel %vm969, %v538, 0.0
  %v1042 = vadd.f32 %v1040, %v1041
  %v1043 = vsel %vm969, %v541, 0.0
  %v1044 = vadd.f32 %v1042, %v1043
  %v1045 = vsel %vm969, %v546, 0.0
  %v1046 = vadd.f32 %v1044, %v1045
  %v1047 = vsel %vm969, %v549, 0.0
  %v1048 = vadd.f32 %v1046, %v1047
  %v1049 = vsel %vm969, %v554, 0.0
  %v1050 = vadd.f32 %v1048, %v1049
  %v1051 = vsel %vm969, %v557, 0.0
  %v1052 = vadd.f32 %v1050, %v1051
  %v1053 = vsel %vm969, %v562, 0.0
  %v1054 = vadd.f32 %v1052, %v1053
  %v1055 = vsel %vm969, %v565, 0.0
  %v1056 = vadd.f32 %v1054, %v1055
  %v1057 = vsel %vm969, %v570, 0.0
  %v1058 = vadd.f32 %v1056, %v1057
  %v1059 = vsel %vm969, %v573, 0.0
  %v1060 = vadd.f32 %v1058, %v1059
  %v1061 = vsel %vm969, %v578, 0.0
  %v1062 = vadd.f32 %v1060, %v1061
  %v1063 = vsel %vm969, %v581, 0.0
  %v1064 = vadd.f32 %v1062, %v1063
  %v1065 = vsel %vm969, %v586, 0.0
  %v1066 = vadd.f32 %v1064, %v1065
  %v1067 = vsel %vm969, %v589, 0.0
  %v1068 = vadd.f32 %v1066, %v1067
  %v1069 = vsel %vm969, %v594, 0.0
  %v1070 = vadd.f32 %v1068, %v1069
  %v1071 = vsel %vm969, %v597, 0.0
  %v1072 = vadd.f32 %v1070, %v1071
  %v1073 = vsel %vm969, %v602, 0.0
  %v1074 = vadd.f32 %v1072, %v1073
  %v1075 = vsel %vm969, %v605, 0.0
  %v1076 = vadd.f32 %v1074, %v1075
  %v1077 = vsel %vm969, %v610, 0.0
  %v1078 = vadd.f32 %v1076, %v1077
  %v1079 = vsel %vm969, %v613, 0.0
  %v1080 = vadd.f32 %v1078, %v1079
  %v1081 = vsel %vm969, %v618, 0.0
  %v1082 = vadd.f32 %v1080, %v1081
  %v1083 = vsel %vm969, %v621, 0.0
  %v1084 = vadd.f32 %v1082, %v1083
  %v1085 = vsel %vm969, %v626, 0.0
  %v1086 = vadd.f32 %v1084, %v1085
  %v1087 = vsel %vm969, %v629, 0.0
  %v1088 = vadd.f32 %v1086, %v1087
  %v1089 = vsel %vm969, %v634, 0.0
  %v1090 = vadd.f32 %v1088, %v1089
  %v1091 = vsel %vm969, %v637, 0.0
  %v1092 = vadd.f32 %v1090, %v1091
  %v1093 = vsel %vm969, %v642, 0.0
  %v1094 = vadd.f32 %v1092, %v1093
  %v1095 = vsel %vm969, %v645, 0.0
  %v1096 = vadd.f32 %v1094, %v1095
  %v1097 = vrot.slane %v1096, 4
  %v1098 = vadd.f32 %v1096, %v1097
  %v1099 = vrot.slane %v1098, 2
  %v1100 = vadd.f32 %v1098, %v1099
  %v1101 = vrot.slane %v1100, 1
  %v1102 = vadd.f32 %v1100, %v1101
  %v1103 = vmul.f32 %v394, %v394
  %v1104 = vmul.f32 %v397, %v397
  %v1105 = vmul.f32 %v402, %v402
  %v1106 = vmul.f32 %v405, %v405
  %v1107 = vmul.f32 %v410, %v410
  %v1108 = vmul.f32 %v413, %v413
  %v1109 = vmul.f32 %v418, %v418
  %v1110 = vmul.f32 %v421, %v421
  %v1111 = vmul.f32 %v426, %v426
  %v1112 = vmul.f32 %v429, %v429
  %v1113 = vmul.f32 %v434, %v434
  %v1114 = vmul.f32 %v437, %v437
  %v1115 = vmul.f32 %v442, %v442
  %v1116 = vmul.f32 %v445, %v445
  %v1117 = vmul.f32 %v450, %v450
  %v1118 = vmul.f32 %v453, %v453
  %v1119 = vmul.f32 %v458, %v458
  %v1120 = vmul.f32 %v461, %v461
  %v1121 = vmul.f32 %v466, %v466
  %v1122 = vmul.f32 %v469, %v469
  %v1123 = vmul.f32 %v474, %v474
  %v1124 = vmul.f32 %v477, %v477
  %v1125 = vmul.f32 %v482, %v482
  %v1126 = vmul.f32 %v485, %v485
  %v1127 = vmul.f32 %v490, %v490
  %v1128 = vmul.f32 %v493, %v493
  %v1129 = vmul.f32 %v498, %v498
  %v1130 = vmul.f32 %v501, %v501
  %v1131 = vmul.f32 %v506, %v506
  %v1132 = vmul.f32 %v509, %v509
  %v1133 = vmul.f32 %v514, %v514
  %v1134 = vmul.f32 %v517, %v517
  %v1135 = vmul.f32 %v522, %v522
  %v1136 = vmul.f32 %v525, %v525
  %v1137 = vmul.f32 %v530, %v530
  %v1138 = vmul.f32 %v533, %v533
  %v1139 = vmul.f32 %v538, %v538
  %v1140 = vmul.f32 %v541, %v541
  %v1141 = vmul.f32 %v546, %v546
  %v1142 = vmul.f32 %v549, %v549
  %v1143 = vmul.f32 %v554, %v554
  %v1144 = vmul.f32 %v557, %v557
  %v1145 = vmul.f32 %v562, %v562
  %v1146 = vmul.f32 %v565, %v565
  %v1147 = vmul.f32 %v570, %v570
  %v1148 = vmul.f32 %v573, %v573
  %v1149 = vmul.f32 %v578, %v578
  %v1150 = vmul.f32 %v581, %v581
  %v1151 = vmul.f32 %v586, %v586
  %v1152 = vmul.f32 %v589, %v589
  %v1153 = vmul.f32 %v594, %v594
  %v1154 = vmul.f32 %v597, %v597
  %v1155 = vmul.f32 %v602, %v602
  %v1156 = vmul.f32 %v605, %v605
  %v1157 = vmul.f32 %v610, %v610
  %v1158 = vmul.f32 %v613, %v613
  %v1159 = vmul.f32 %v618, %v618
  %v1160 = vmul.f32 %v621, %v621
  %v1161 = vmul.f32 %v626, %v626
  %v1162 = vmul.f32 %v629, %v629
  %v1163 = vmul.f32 %v634, %v634
  %v1164 = vmul.f32 %v637, %v637
  %v1165 = vmul.f32 %v642, %v642
  %v1166 = vmul.f32 %v645, %v645
  %v1167 = vsel %vm969, %v1103, 0.0
  %v1168 = vsel %vm969, %v1104, 0.0
  %v1169 = vadd.f32 %v1167, %v1168
  %v1170 = vsel %vm969, %v1105, 0.0
  %v1171 = vadd.f32 %v1169, %v1170
  %v1172 = vsel %vm969, %v1106, 0.0
  %v1173 = vadd.f32 %v1171, %v1172
  %v1174 = vsel %vm969, %v1107, 0.0
  %v1175 = vadd.f32 %v1173, %v1174
  %v1176 = vsel %vm969, %v1108, 0.0
  %v1177 = vadd.f32 %v1175, %v1176
  %v1178 = vsel %vm969, %v1109, 0.0
  %v1179 = vadd.f32 %v1177, %v1178
  %v1180 = vsel %vm969, %v1110, 0.0
  %v1181 = vadd.f32 %v1179, %v1180
  %v1182 = vsel %vm969, %v1111, 0.0
  %v1183 = vadd.f32 %v1181, %v1182
  %v1184 = vsel %vm969, %v1112, 0.0
  %v1185 = vadd.f32 %v1183, %v1184
  %v1186 = vsel %vm969, %v1113, 0.0
  %v1187 = vadd.f32 %v1185, %v1186
  %v1188 = vsel %vm969, %v1114, 0.0
  %v1189 = vadd.f32 %v1187, %v1188
  %v1190 = vsel %vm969, %v1115, 0.0
  %v1191 = vadd.f32 %v1189, %v1190
  %v1192 = vsel %vm969, %v1116, 0.0
  %v1193 = vadd.f32 %v1191, %v1192
  %v1194 = vsel %vm969, %v1117, 0.0
  %v1195 = vadd.f32 %v1193, %v1194
  %v1196 = vsel %vm969, %v1118, 0.0
  %v1197 = vadd.f32 %v1195, %v1196
  %v1198 = vsel %vm969, %v1119, 0.0
  %v1199 = vadd.f32 %v1197, %v1198
  %v1200 = vsel %vm969, %v1120, 0.0
  %v1201 = vadd.f32 %v1199, %v1200
  %v1202 = vsel %vm969, %v1121, 0.0
  %v1203 = vadd.f32 %v1201, %v1202
  %v1204 = vsel %vm969, %v1122, 0.0
  %v1205 = vadd.f32 %v1203, %v1204
  %v1206 = vsel %vm969, %v1123, 0.0
  %v1207 = vadd.f32 %v1205, %v1206
  %v1208 = vsel %vm969, %v1124, 0.0
  %v1209 = vadd.f32 %v1207, %v1208
  %v1210 = vsel %vm969, %v1125, 0.0
  %v1211 = vadd.f32 %v1209, %v1210
  %v1212 = vsel %vm969, %v1126, 0.0
  %v1213 = vadd.f32 %v1211, %v1212
  %v1214 = vsel %vm969, %v1127, 0.0
  %v1215 = vadd.f32 %v1213, %v1214
  %v1216 = vsel %vm969, %v1128, 0.0
  %v1217 = vadd.f32 %v1215, %v1216
  %v1218 = vsel %vm969, %v1129, 0.0
  %v1219 = vadd.f32 %v1217, %v1218
  %v1220 = vsel %vm969, %v1130, 0.0
  %v1221 = vadd.f32 %v1219, %v1220
  %v1222 = vsel %vm969, %v1131, 0.0
  %v1223 = vadd.f32 %v1221, %v1222
  %v1224 = vsel %vm969, %v1132, 0.0
  %v1225 = vadd.f32 %v1223, %v1224
  %v1226 = vsel %vm969, %v1133, 0.0
  %v1227 = vadd.f32 %v1225, %v1226
  %v1228 = vsel %vm969, %v1134, 0.0
  %v1229 = vadd.f32 %v1227, %v1228
  %v1230 = vsel %vm969, %v1135, 0.0
  %v1231 = vadd.f32 %v1229, %v1230
  %v1232 = vsel %vm969, %v1136, 0.0
  %v1233 = vadd.f32 %v1231, %v1232
  %v1234 = vsel %vm969, %v1137, 0.0
  %v1235 = vadd.f32 %v1233, %v1234
  %v1236 = vsel %vm969, %v1138, 0.0
  %v1237 = vadd.f32 %v1235, %v1236
  %v1238 = vsel %vm969, %v1139, 0.0
  %v1239 = vadd.f32 %v1237, %v1238
  %v1240 = vsel %vm969, %v1140, 0.0
  %v1241 = vadd.f32 %v1239, %v1240
  %v1242 = vsel %vm969, %v1141, 0.0
  %v1243 = vadd.f32 %v1241, %v1242
  %v1244 = vsel %vm969, %v1142, 0.0
  %v1245 = vadd.f32 %v1243, %v1244
  %v1246 = vsel %vm969, %v1143, 0.0
  %v1247 = vadd.f32 %v1245, %v1246
  %v1248 = vsel %vm969, %v1144, 0.0
  %v1249 = vadd.f32 %v1247, %v1248
  %v1250 = vsel %vm969, %v1145, 0.0
  %v1251 = vadd.f32 %v1249, %v1250
  %v1252 = vsel %vm969, %v1146, 0.0
  %v1253 = vadd.f32 %v1251, %v1252
  %v1254 = vsel %vm969, %v1147, 0.0
  %v1255 = vadd.f32 %v1253, %v1254
  %v1256 = vsel %vm969, %v1148, 0.0
  %v1257 = vadd.f32 %v1255, %v1256
  %v1258 = vsel %vm969, %v1149, 0.0
  %v1259 = vadd.f32 %v1257, %v1258
  %v1260 = vsel %vm969, %v1150, 0.0
  %v1261 = vadd.f32 %v1259, %v1260
  %v1262 = vsel %vm969, %v1151, 0.0
  %v1263 = vadd.f32 %v1261, %v1262
  %v1264 = vsel %vm969, %v1152, 0.0
  %v1265 = vadd.f32 %v1263, %v1264
  %v1266 = vsel %vm969, %v1153, 0.0
  %v1267 = vadd.f32 %v1265, %v1266
  %v1268 = vsel %vm969, %v1154, 0.0
  %v1269 = vadd.f32 %v1267, %v1268
  %v1270 = vsel %vm969, %v1155, 0.0
  %v1271 = vadd.f32 %v1269, %v1270
  %v1272 = vsel %vm969, %v1156, 0.0
  %v1273 = vadd.f32 %v1271, %v1272
  %v1274 = vsel %vm969, %v1157, 0.0
  %v1275 = vadd.f32 %v1273, %v1274
  %v1276 = vsel %vm969, %v1158, 0.0
  %v1277 = vadd.f32 %v1275, %v1276
  %v1278 = vsel %vm969, %v1159, 0.0
  %v1279 = vadd.f32 %v1277, %v1278
  %v1280 = vsel %vm969, %v1160, 0.0
  %v1281 = vadd.f32 %v1279, %v1280
  %v1282 = vsel %vm969, %v1161, 0.0
  %v1283 = vadd.f32 %v1281, %v1282
  %v1284 = vsel %vm969, %v1162, 0.0
  %v1285 = vadd.f32 %v1283, %v1284
  %v1286 = vsel %vm969, %v1163, 0.0
  %v1287 = vadd.f32 %v1285, %v1286
  %v1288 = vsel %vm969, %v1164, 0.0
  %v1289 = vadd.f32 %v1287, %v1288
  %v1290 = vsel %vm969, %v1165, 0.0
  %v1291 = vadd.f32 %v1289, %v1290
  %v1292 = vsel %vm969, %v1166, 0.0
  %v1293 = vadd.f32 %v1291, %v1292
  %v1294 = vrot.slane %v1293, 4
  %v1295 = vadd.f32 %v1293, %v1294
  %v1296 = vrot.slane %v1295, 2
  %v1297 = vadd.f32 %v1295, %v1296
  %v1298 = vrot.slane %v1297, 1
  %v1299 = vadd.f32 %v1297, %v1298
  %vm1300 = vcmask 1040384
  %v1301 = vsel %vm1300, %v1102, %v1299
  %vm1302 = vcmask 517120
  %1303 = vst.msk [vmem:[%s3] sm:$0x3] %vm1302, %v1301
  // Predicated region
  $region10: #{conv_bn_relu.2} parent=0 // pred_check
    _
  $region11: #{conv_bn_relu.2} parent=0 // pred_check_branch
    %1305 = sbr.rel (0) target = $region13
  $region12: #{conv_bn_relu.2} parent=0 // pred_region
    _
  $region13: #{conv_bn_relu.2} parent=0 // pred_fallthru
    _
  // Predicated region
  $region14: #{conv_bn_relu.2} parent=0 // pred_check
    _
  $region15: #{conv_bn_relu.2} parent=0 // pred_check_branch
    %1307 = sbr.rel (0) target = $region17
  $region16: #{conv_bn_relu.2} parent=0 // pred_region
    _
  $region17: #{conv_bn_relu.2} parent=0 // pred_fallthru
    _
  // Predicated region
  $region18: #{conv_bn_relu.2} parent=0 // pred_check
    _
  $region19: #{conv_bn_relu.2} parent=0 // pred_check_branch
    %1309 = sbr.rel (0) target = $region21
  $region20: #{conv_bn_relu.2} parent=0 // pred_region
    _
  $region21: #{conv_bn_relu.2} parent=0 // pred_fallthru
    _
  // Predicated region
  $region22: #{conv_bn_relu.2} parent=0 // pred_check
    _
  $region23: #{conv_bn_relu.2} parent=0 // pred_check_branch
    %1311 = sbr.rel (0) target = $region25
  $region24: #{conv_bn_relu.2} parent=0 // pred_region
    _
  $region25: #{conv_bn_relu.2} parent=0 // pred_fallthru
    _

</llo_original>
